<compile_context>
chip_gen: v6e
topology: v6e:2x2x1
jax: 0.10.0
libtpu: 0.0.40
codegen_flags: <defaults>
</compile_context>

<pallas_src>
import functools

import jax
import jax.numpy as jnp
from jax.experimental import pallas as pl
from jax.experimental.pallas import tpu as pltpu

EPS = 1e-5


def _sigmoid_approx(z):
    # exp on the EUP; divide replaced by the EUP approximate reciprocal.
    return pl.reciprocal(1.0 + jnp.exp(-z), approx=True)


def _sigmoid_exact(z):
    return 1.0 / (1.0 + jnp.exp(-z))


def _bn_train(h, gamma, beta):
    # BatchNorm1d training-mode forward on (B*L, C): per-channel stats over the
    # flattened (batch, length) axis, biased variance, eps=1e-5.  Mean-centered
    # two-pass variance (better conditioned than E[x^2] - mean^2).
    m = jnp.mean(h, axis=0, keepdims=True)
    c = h - m
    v = jnp.mean(c * c, axis=0, keepdims=True)
    return c * jax.lax.rsqrt(v + EPS) * gamma + beta


def _drb_kernel(x_ref, w1_ref, g1_ref, be1_ref,
                w2bd_ref, g2_ref, be2_ref,
                w3_ref, g3_ref, be3_ref,
                wse1_ref, wse2_ref, out_ref, *, B, L):
    BL, dim = x_ref.shape
    C1 = g1_ref.shape[-1]

    # --- Conv1d(dim -> n_group*dim, k=1) + BN + Swish (bias cancels in BN) ---
    h = jnp.dot(x_ref[...].astype(jnp.bfloat16), w1_ref[...],
                preferred_element_type=jnp.float32)
    h = _bn_train(h, g1_ref[...], be1_ref[...])
    h = h * _sigmoid_approx(h)

    # --- grouped Conv1d(k=5, pad=2, groups=n_group) + BN + Swish -------------
    # Tap k reads in[l + k - 2] (zero padded).  On the flattened (B*L, C1)
    # array that is a sublane roll by (k-2) plus zeroing the rows that cross a
    # batch boundary.  Each tap hits the MXU against a block-diagonal (C1, C1)
    # weight and accumulates in f32.  No pad scratch, no concatenates.
    rmod = jax.lax.rem(jax.lax.broadcasted_iota(jnp.int32, (BL, C1), 0),
                       jnp.int32(L))
    acc = jnp.zeros((BL, C1), jnp.float32)
    for k in range(5):
        s = k - 2                               # tap reads in[l + s]
        if s == 0:
            t = h
        else:
            # t[r] = h[(r + s) mod BL]  (np.roll convention: out[i] = x[i - shift])
            t = pltpu.roll(h, shift=(-s) % BL, axis=0)
            if s > 0:
                t = jnp.where(rmod < (L - s), t, 0.0)
            else:
                t = jnp.where(rmod >= (-s), t, 0.0)
        acc = acc + jnp.dot(t.astype(jnp.bfloat16), w2bd_ref[k],
                            preferred_element_type=jnp.float32)
    h = _bn_train(acc, g2_ref[...], be2_ref[...])
    h = h * _sigmoid_approx(h)

    # --- Conv1d(n_group*dim -> dim, k=1) + BN --------------------------------
    h = jnp.dot(h.astype(jnp.bfloat16), w3_ref[...],
                preferred_element_type=jnp.float32)
    h = _bn_train(h, g3_ref[...], be3_ref[...])

    # --- SELayer(dim, reduction=16): tiny projections, f32, exact sigmoid ----
    h3 = h.reshape(B, L, dim)
    y = jnp.mean(h3, axis=1)                                        # (B, dim)
    y = jnp.maximum(jnp.dot(y, wse1_ref[...],
                            preferred_element_type=jnp.float32), 0.0)
    y = _sigmoid_exact(jnp.dot(y, wse2_ref[...],
                               preferred_element_type=jnp.float32))  # (B, dim)
    h = (h3 * y[:, None, :]).reshape(BL, dim)

    # Residual.
    out_ref[...] = x_ref[...] + 0.1 * h


def decoder_residual_block(x_ncl, params, n_group):
    """params are PyTorch-shaped; x_ncl is (B, dim, L)."""
    (w1, b1, g1, be1, w2, b2, g2, be2, w3, b3, g3, be3, wse1, wse2) = params
    # Conv biases added immediately before training-mode BatchNorm cancel
    # exactly when the per-channel mean is subtracted -> not shipped to VMEM.
    del b1, b2, b3
    B, dim, L = x_ncl.shape
    G = n_group
    C1 = G * dim
    d = C1 // G

    # --- glue: weight layout prep outside the kernel -------------------------
    # 1x1 convs: (O, I) -> (I, O), bf16 for the MXU.  SE linears stay f32.
    w1t = jnp.transpose(w1).astype(jnp.bfloat16)                  # (dim, C1)
    w3t = jnp.transpose(w3).astype(jnp.bfloat16)                  # (C1, dim)
    wse1t = jnp.transpose(wse1).astype(jnp.float32)               # (dim, r)
    wse2t = jnp.transpose(wse2).astype(jnp.float32)               # (r, dim)

    # Grouped conv weight (C1, d, 5) -> per-tap block-diagonal (5, C1, C1):
    #   w2bd[k, g*d + ci, g*d + co] = w2[g*d + co, ci, k], zero off-diagonal.
    w2r = jnp.transpose(w2.reshape(G, d, d, 5), (3, 0, 2, 1))     # [k, g, ci, co]
    eye = jnp.eye(G, dtype=w2.dtype)
    w2bd = jnp.einsum('kgic,gh->kgihc', w2r, eye).reshape(5, C1, C1)
    w2bd = w2bd.astype(jnp.bfloat16)

    row = lambda v: v.reshape(1, -1).astype(jnp.float32)
    x_flat = jnp.transpose(x_ncl, (0, 2, 1)).reshape(B * L, dim).astype(jnp.float32)

    args = (x_flat,
            w1t, row(g1), row(be1),
            w2bd, row(g2), row(be2),
            w3t, row(g3), row(be3),
            wse1t, wse2t)

    # Per-generation VMEM budget: ~3/4 of physical, capped at 100 MiB
    # (-> ~96 MiB on v5e/v6e's 128 MiB, ~48 MiB on v7x's 64 MiB).
    try:
        vmem_cap = pltpu.get_tpu_info().vmem_capacity_bytes
    except Exception:
        vmem_cap = 64 * 1024 * 1024
    vmem_limit = int(min(vmem_cap * 3 // 4, 100 * 1024 * 1024))

    kernel = functools.partial(_drb_kernel, B=B, L=L)
    out_flat = pl.pallas_call(
        kernel,
        out_shape=jax.ShapeDtypeStruct((B * L, dim), jnp.float32),
        in_specs=[pl.BlockSpec(memory_space=pltpu.MemorySpace.VMEM)
                  for _ in args],
        out_specs=pl.BlockSpec(memory_space=pltpu.MemorySpace.VMEM),
        compiler_params=pltpu.CompilerParams(vmem_limit_bytes=vmem_limit),
    )(*args)
    return jnp.transpose(out_flat.reshape(B, L, dim), (0, 2, 1))


def reference(x, params, n_group):
    """Pure-JAX reference mirroring the PyTorch forward (training-mode BN)."""
    (w1, b1, g1, be1, w2, b2, g2, be2, w3, b3, g3, be3, wse1, wse2) = params

    def bn(h, g, b):
        m = h.mean(axis=(0, 2), keepdims=True)
        v = ((h - m) ** 2).mean(axis=(0, 2), keepdims=True)
        return (h - m) / jnp.sqrt(v + EPS) * g[None, :, None] + b[None, :, None]

    def conv(h, w, b, groups=1, pad=0):
        o = jax.lax.conv_general_dilated(
            h, w, window_strides=(1,), padding=[(pad, pad)],
            dimension_numbers=('NCH', 'OIH', 'NCH'),
            feature_group_count=groups)
        return o + b[None, :, None]

    h = conv(x, w1[:, :, None], b1)
    h = bn(h, g1, be1); h = h * jax.nn.sigmoid(h)
    h = conv(h, w2, b2, groups=n_group, pad=2)
    h = bn(h, g2, be2); h = h * jax.nn.sigmoid(h)
    h = conv(h, w3[:, :, None], b3)
    h = bn(h, g3, be3)
    y = h.mean(axis=2)
    y = jax.nn.relu(y @ wse1.T)
    y = jax.nn.sigmoid(y @ wse2.T)
    h = h * y[:, :, None]
    return x + 0.1 * h


if __name__ == "__main__":
    B, dim, L, n_group = 2, 32, 64, 2       # dim >= 16 so SE reduction=16 is valid
    C1 = n_group * dim
    r = dim // 16

    key = jax.random.PRNGKey(0)
    ks = jax.random.split(key, 16)
    f32 = jnp.float32

    x = jax.random.normal(ks[0], (B, dim, L), f32)

    w1 = 0.2 * jax.random.normal(ks[1], (C1, dim), f32)
    b1 = 0.1 * jax.random.normal(ks[2], (C1,), f32)
    g1 = 1.0 + 0.1 * jax.random.normal(ks[3], (C1,), f32)
    be1 = 0.1 * jax.random.normal(ks[4], (C1,), f32)

    w2 = 0.2 * jax.random.normal(ks[5], (C1, dim, 5), f32)   # grouped conv weight
    b2 = 0.1 * jax.random.normal(ks[6], (C1,), f32)
    g2 = 1.0 + 0.1 * jax.random.normal(ks[7], (C1,), f32)
    be2 = 0.1 * jax.random.normal(ks[8], (C1,), f32)

    w3 = 0.2 * jax.random.normal(ks[9], (dim, C1), f32)
    b3 = 0.1 * jax.random.normal(ks[10], (dim,), f32)
    g3 = 1.0 + 0.1 * jax.random.normal(ks[11], (dim,), f32)
    be3 = 0.1 * jax.random.normal(ks[12], (dim,), f32)

    wse1 = 0.5 * jax.random.normal(ks[13], (r, dim), f32)    # Linear(dim, dim//16), no bias
    wse2 = 0.5 * jax.random.normal(ks[14], (dim, r), f32)    # Linear(dim//16, dim), no bias

    params = (w1, b1, g1, be1, w2, b2, g2, be2, w3, b3, g3, be3, wse1, wse2)

    out = decoder_residual_block(x, params, n_group)
    out = jax.block_until_ready(out)

    ref = reference(x, params, n_group)
    err = float(jnp.max(jnp.abs(out - ref)))
    scale = float(jnp.max(jnp.abs(ref))) + 1e-8
    assert err / scale < 3e-2, f"kernel/reference mismatch: abs_err={err}, scale={scale}"

    print("KERNEL_OK")
</pallas_src>

<mosaic_0001>
module attributes {stable_mosaic.version = 11 : i64} {
  func.func @_drb_kernel(%arg0: memref<128x32xf32, #tpu.memory_space<vmem>>, %arg1: memref<32x64xbf16, #tpu.memory_space<vmem>>, %arg2: memref<1x64xf32, #tpu.memory_space<vmem>>, %arg3: memref<1x64xf32, #tpu.memory_space<vmem>>, %arg4: memref<5x64x64xbf16, #tpu.memory_space<vmem>>, %arg5: memref<1x64xf32, #tpu.memory_space<vmem>>, %arg6: memref<1x64xf32, #tpu.memory_space<vmem>>, %arg7: memref<64x32xbf16, #tpu.memory_space<vmem>>, %arg8: memref<1x32xf32, #tpu.memory_space<vmem>>, %arg9: memref<1x32xf32, #tpu.memory_space<vmem>>, %arg10: memref<32x2xf32, #tpu.memory_space<vmem>>, %arg11: memref<2x32xf32, #tpu.memory_space<vmem>>, %arg12: memref<128x32xf32, #tpu.memory_space<vmem>>) attributes {dimension_semantics = [], scalar_prefetch = 0 : i64, scratch_operands = 0 : i64, tpu.core_type = #tpu.core_type<tc>} {
    %c0 = arith.constant 0 : index
    %c0_0 = arith.constant 0 : index
    %0 = vector.load %arg0[%c0, %c0_0] : memref<128x32xf32, #tpu.memory_space<vmem>>, vector<128x32xf32>
    %1 = arith.truncf %0 : vector<128x32xf32> to vector<128x32xbf16>
    %c0_1 = arith.constant 0 : index
    %c0_2 = arith.constant 0 : index
    %2 = vector.load %arg1[%c0_1, %c0_2] : memref<32x64xbf16, #tpu.memory_space<vmem>>, vector<32x64xbf16>
    %cst = arith.constant dense<0.000000e+00> : vector<128x64xf32>
    %3 = tpu.matmul %1, %2, %cst {dimension_numbers = #tpu.dot_dimension_numbers<[1], [0], [0], [1], [0, 0, 1, 1], [], []>} : vector<128x32xbf16>, vector<32x64xbf16>, vector<128x64xf32> -> vector<128x64xf32>
    %c0_3 = arith.constant 0 : index
    %c0_4 = arith.constant 0 : index
    %4 = vector.load %arg2[%c0_3, %c0_4] : memref<1x64xf32, #tpu.memory_space<vmem>>, vector<1x64xf32>
    %c0_5 = arith.constant 0 : index
    %c0_6 = arith.constant 0 : index
    %5 = vector.load %arg3[%c0_5, %c0_6] : memref<1x64xf32, #tpu.memory_space<vmem>>, vector<1x64xf32>
    %cst_7 = arith.constant dense<0.000000e+00> : vector<64xf32>
    %6 = vector.multi_reduction <add>, %3, %cst_7 [0] : vector<128x64xf32> to vector<64xf32>
    %7 = vector.shape_cast %6 : vector<64xf32> to vector<1x64xf32>
    %cst_8 = arith.constant 1.280000e+02 : f32
    %8 = vector.broadcast %cst_8 : f32 to vector<1x64xf32>
    %9 = arith.divf %7, %8 : vector<1x64xf32>
    %10 = vector.broadcast %9 : vector<1x64xf32> to vector<128x64xf32>
    %11 = arith.subf %3, %10 : vector<128x64xf32>
    %12 = arith.mulf %11, %11 : vector<128x64xf32>
    %cst_9 = arith.constant dense<0.000000e+00> : vector<64xf32>
    %13 = vector.multi_reduction <add>, %12, %cst_9 [0] : vector<128x64xf32> to vector<64xf32>
    %14 = vector.shape_cast %13 : vector<64xf32> to vector<1x64xf32>
    %cst_10 = arith.constant 1.280000e+02 : f32
    %15 = vector.broadcast %cst_10 : f32 to vector<1x64xf32>
    %16 = arith.divf %14, %15 : vector<1x64xf32>
    %cst_11 = arith.constant 9.99999974E-6 : f32
    %17 = vector.broadcast %cst_11 : f32 to vector<1x64xf32>
    %18 = arith.addf %16, %17 : vector<1x64xf32>
    %19 = math.rsqrt %18 : vector<1x64xf32>
    %20 = vector.broadcast %19 : vector<1x64xf32> to vector<128x64xf32>
    %21 = arith.mulf %11, %20 : vector<128x64xf32>
    %22 = vector.broadcast %4 : vector<1x64xf32> to vector<128x64xf32>
    %23 = arith.mulf %21, %22 : vector<128x64xf32>
    %24 = vector.broadcast %5 : vector<1x64xf32> to vector<128x64xf32>
    %25 = arith.addf %23, %24 : vector<128x64xf32>
    %cst_12 = arith.constant 0.000000e+00 : f32
    %26 = vector.broadcast %cst_12 : f32 to vector<128x64xf32>
    %27 = arith.subf %26, %25 : vector<128x64xf32>
    %28 = math.exp %27 : vector<128x64xf32>
    %cst_13 = arith.constant 1.000000e+00 : f32
    %29 = vector.broadcast %cst_13 : f32 to vector<128x64xf32>
    %30 = arith.addf %29, %28 : vector<128x64xf32>
    %31 = tpu.reciprocal %30 {approx = true} : vector<128x64xf32> -> vector<128x64xf32>
    %32 = arith.mulf %25, %31 : vector<128x64xf32>
    %33 = tpu.iota {dimensions = array<i32: 0>} : vector<128x64xi32>
    %c64_i32 = arith.constant 64 : i32
    %34 = vector.broadcast %c64_i32 : i32 to vector<128x64xi32>
    %35 = arith.remsi %33, %34 : vector<128x64xi32>
    %cst_14 = arith.constant 0.000000e+00 : f32
    %36 = vector.broadcast %cst_14 : f32 to vector<128x64xf32>
    %c2_i32 = arith.constant 2 : i32
    %37 = tpu.dynamic_rotate %32 by %c2_i32 dim 0 : vector<128x64xf32>, i32 -> vector<128x64xf32>
    %c2_i32_15 = arith.constant 2 : i32
    %38 = vector.broadcast %c2_i32_15 : i32 to vector<128x64xi32>
    %39 = arith.cmpi sge, %35, %38 : vector<128x64xi32>
    %cst_16 = arith.constant 0.000000e+00 : f32
    %40 = vector.broadcast %cst_16 : f32 to vector<128x64xf32>
    %41 = arith.select %39, %37, %40 : vector<128x64xi1>, vector<128x64xf32>
    %42 = arith.truncf %41 : vector<128x64xf32> to vector<128x64xbf16>
    %c0_17 = arith.constant 0 : index
    %c0_18 = arith.constant 0 : index
    %c0_19 = arith.constant 0 : index
    %43 = vector.load %arg4[%c0_17, %c0_18, %c0_19] : memref<5x64x64xbf16, #tpu.memory_space<vmem>>, vector<1x64x64xbf16>
    %44 = vector.shape_cast %43 : vector<1x64x64xbf16> to vector<64x64xbf16>
    %cst_20 = arith.constant dense<0.000000e+00> : vector<128x64xf32>
    %45 = tpu.matmul %42, %44, %cst_20 {dimension_numbers = #tpu.dot_dimension_numbers<[1], [0], [0], [1], [0, 0, 1, 1], [], []>} : vector<128x64xbf16>, vector<64x64xbf16>, vector<128x64xf32> -> vector<128x64xf32>
    %46 = arith.addf %36, %45 : vector<128x64xf32>
    %c1_i32 = arith.constant 1 : i32
    %47 = tpu.dynamic_rotate %32 by %c1_i32 dim 0 : vector<128x64xf32>, i32 -> vector<128x64xf32>
    %c1_i32_21 = arith.constant 1 : i32
    %48 = vector.broadcast %c1_i32_21 : i32 to vector<128x64xi32>
    %49 = arith.cmpi sge, %35, %48 : vector<128x64xi32>
    %cst_22 = arith.constant 0.000000e+00 : f32
    %50 = vector.broadcast %cst_22 : f32 to vector<128x64xf32>
    %51 = arith.select %49, %47, %50 : vector<128x64xi1>, vector<128x64xf32>
    %52 = arith.truncf %51 : vector<128x64xf32> to vector<128x64xbf16>
    %c1 = arith.constant 1 : index
    %c0_23 = arith.constant 0 : index
    %c0_24 = arith.constant 0 : index
    %53 = vector.load %arg4[%c1, %c0_23, %c0_24] : memref<5x64x64xbf16, #tpu.memory_space<vmem>>, vector<1x64x64xbf16>
    %54 = vector.shape_cast %53 : vector<1x64x64xbf16> to vector<64x64xbf16>
    %cst_25 = arith.constant dense<0.000000e+00> : vector<128x64xf32>
    %55 = tpu.matmul %52, %54, %cst_25 {dimension_numbers = #tpu.dot_dimension_numbers<[1], [0], [0], [1], [0, 0, 1, 1], [], []>} : vector<128x64xbf16>, vector<64x64xbf16>, vector<128x64xf32> -> vector<128x64xf32>
    %56 = arith.addf %46, %55 : vector<128x64xf32>
    %57 = arith.truncf %32 : vector<128x64xf32> to vector<128x64xbf16>
    %c2 = arith.constant 2 : index
    %c0_26 = arith.constant 0 : index
    %c0_27 = arith.constant 0 : index
    %58 = vector.load %arg4[%c2, %c0_26, %c0_27] : memref<5x64x64xbf16, #tpu.memory_space<vmem>>, vector<1x64x64xbf16>
    %59 = vector.shape_cast %58 : vector<1x64x64xbf16> to vector<64x64xbf16>
    %cst_28 = arith.constant dense<0.000000e+00> : vector<128x64xf32>
    %60 = tpu.matmul %57, %59, %cst_28 {dimension_numbers = #tpu.dot_dimension_numbers<[1], [0], [0], [1], [0, 0, 1, 1], [], []>} : vector<128x64xbf16>, vector<64x64xbf16>, vector<128x64xf32> -> vector<128x64xf32>
    %61 = arith.addf %56, %60 : vector<128x64xf32>
    %c127_i32 = arith.constant 127 : i32
    %62 = tpu.dynamic_rotate %32 by %c127_i32 dim 0 : vector<128x64xf32>, i32 -> vector<128x64xf32>
    %c63_i32 = arith.constant 63 : i32
    %63 = vector.broadcast %c63_i32 : i32 to vector<128x64xi32>
    %64 = arith.cmpi slt, %35, %63 : vector<128x64xi32>
    %cst_29 = arith.constant 0.000000e+00 : f32
    %65 = vector.broadcast %cst_29 : f32 to vector<128x64xf32>
    %66 = arith.select %64, %62, %65 : vector<128x64xi1>, vector<128x64xf32>
    %67 = arith.truncf %66 : vector<128x64xf32> to vector<128x64xbf16>
    %c3 = arith.constant 3 : index
    %c0_30 = arith.constant 0 : index
    %c0_31 = arith.constant 0 : index
    %68 = vector.load %arg4[%c3, %c0_30, %c0_31] : memref<5x64x64xbf16, #tpu.memory_space<vmem>>, vector<1x64x64xbf16>
    %69 = vector.shape_cast %68 : vector<1x64x64xbf16> to vector<64x64xbf16>
    %cst_32 = arith.constant dense<0.000000e+00> : vector<128x64xf32>
    %70 = tpu.matmul %67, %69, %cst_32 {dimension_numbers = #tpu.dot_dimension_numbers<[1], [0], [0], [1], [0, 0, 1, 1], [], []>} : vector<128x64xbf16>, vector<64x64xbf16>, vector<128x64xf32> -> vector<128x64xf32>
    %71 = arith.addf %61, %70 : vector<128x64xf32>
    %c126_i32 = arith.constant 126 : i32
    %72 = tpu.dynamic_rotate %32 by %c126_i32 dim 0 : vector<128x64xf32>, i32 -> vector<128x64xf32>
    %c62_i32 = arith.constant 62 : i32
    %73 = vector.broadcast %c62_i32 : i32 to vector<128x64xi32>
    %74 = arith.cmpi slt, %35, %73 : vector<128x64xi32>
    %cst_33 = arith.constant 0.000000e+00 : f32
    %75 = vector.broadcast %cst_33 : f32 to vector<128x64xf32>
    %76 = arith.select %74, %72, %75 : vector<128x64xi1>, vector<128x64xf32>
    %77 = arith.truncf %76 : vector<128x64xf32> to vector<128x64xbf16>
    %c4 = arith.constant 4 : index
    %c0_34 = arith.constant 0 : index
    %c0_35 = arith.constant 0 : index
    %78 = vector.load %arg4[%c4, %c0_34, %c0_35] : memref<5x64x64xbf16, #tpu.memory_space<vmem>>, vector<1x64x64xbf16>
    %79 = vector.shape_cast %78 : vector<1x64x64xbf16> to vector<64x64xbf16>
    %cst_36 = arith.constant dense<0.000000e+00> : vector<128x64xf32>
    %80 = tpu.matmul %77, %79, %cst_36 {dimension_numbers = #tpu.dot_dimension_numbers<[1], [0], [0], [1], [0, 0, 1, 1], [], []>} : vector<128x64xbf16>, vector<64x64xbf16>, vector<128x64xf32> -> vector<128x64xf32>
    %81 = arith.addf %71, %80 : vector<128x64xf32>
    %c0_37 = arith.constant 0 : index
    %c0_38 = arith.constant 0 : index
    %82 = vector.load %arg5[%c0_37, %c0_38] : memref<1x64xf32, #tpu.memory_space<vmem>>, vector<1x64xf32>
    %c0_39 = arith.constant 0 : index
    %c0_40 = arith.constant 0 : index
    %83 = vector.load %arg6[%c0_39, %c0_40] : memref<1x64xf32, #tpu.memory_space<vmem>>, vector<1x64xf32>
    %cst_41 = arith.constant dense<0.000000e+00> : vector<64xf32>
    %84 = vector.multi_reduction <add>, %81, %cst_41 [0] : vector<128x64xf32> to vector<64xf32>
    %85 = vector.shape_cast %84 : vector<64xf32> to vector<1x64xf32>
    %cst_42 = arith.constant 1.280000e+02 : f32
    %86 = vector.broadcast %cst_42 : f32 to vector<1x64xf32>
    %87 = arith.divf %85, %86 : vector<1x64xf32>
    %88 = vector.broadcast %87 : vector<1x64xf32> to vector<128x64xf32>
    %89 = arith.subf %81, %88 : vector<128x64xf32>
    %90 = arith.mulf %89, %89 : vector<128x64xf32>
    %cst_43 = arith.constant dense<0.000000e+00> : vector<64xf32>
    %91 = vector.multi_reduction <add>, %90, %cst_43 [0] : vector<128x64xf32> to vector<64xf32>
    %92 = vector.shape_cast %91 : vector<64xf32> to vector<1x64xf32>
    %cst_44 = arith.constant 1.280000e+02 : f32
    %93 = vector.broadcast %cst_44 : f32 to vector<1x64xf32>
    %94 = arith.divf %92, %93 : vector<1x64xf32>
    %cst_45 = arith.constant 9.99999974E-6 : f32
    %95 = vector.broadcast %cst_45 : f32 to vector<1x64xf32>
    %96 = arith.addf %94, %95 : vector<1x64xf32>
    %97 = math.rsqrt %96 : vector<1x64xf32>
    %98 = vector.broadcast %97 : vector<1x64xf32> to vector<128x64xf32>
    %99 = arith.mulf %89, %98 : vector<128x64xf32>
    %100 = vector.broadcast %82 : vector<1x64xf32> to vector<128x64xf32>
    %101 = arith.mulf %99, %100 : vector<128x64xf32>
    %102 = vector.broadcast %83 : vector<1x64xf32> to vector<128x64xf32>
    %103 = arith.addf %101, %102 : vector<128x64xf32>
    %cst_46 = arith.constant 0.000000e+00 : f32
    %104 = vector.broadcast %cst_46 : f32 to vector<128x64xf32>
    %105 = arith.subf %104, %103 : vector<128x64xf32>
    %106 = math.exp %105 : vector<128x64xf32>
    %cst_47 = arith.constant 1.000000e+00 : f32
    %107 = vector.broadcast %cst_47 : f32 to vector<128x64xf32>
    %108 = arith.addf %107, %106 : vector<128x64xf32>
    %109 = tpu.reciprocal %108 {approx = true} : vector<128x64xf32> -> vector<128x64xf32>
    %110 = arith.mulf %103, %109 : vector<128x64xf32>
    %111 = arith.truncf %110 : vector<128x64xf32> to vector<128x64xbf16>
    %c0_48 = arith.constant 0 : index
    %c0_49 = arith.constant 0 : index
    %112 = vector.load %arg7[%c0_48, %c0_49] : memref<64x32xbf16, #tpu.memory_space<vmem>>, vector<64x32xbf16>
    %cst_50 = arith.constant dense<0.000000e+00> : vector<128x32xf32>
    %113 = tpu.matmul %111, %112, %cst_50 {dimension_numbers = #tpu.dot_dimension_numbers<[1], [0], [0], [1], [0, 0, 1, 1], [], []>} : vector<128x64xbf16>, vector<64x32xbf16>, vector<128x32xf32> -> vector<128x32xf32>
    %c0_51 = arith.constant 0 : index
    %c0_52 = arith.constant 0 : index
    %114 = vector.load %arg8[%c0_51, %c0_52] : memref<1x32xf32, #tpu.memory_space<vmem>>, vector<1x32xf32>
    %c0_53 = arith.constant 0 : index
    %c0_54 = arith.constant 0 : index
    %115 = vector.load %arg9[%c0_53, %c0_54] : memref<1x32xf32, #tpu.memory_space<vmem>>, vector<1x32xf32>
    %cst_55 = arith.constant dense<0.000000e+00> : vector<32xf32>
    %116 = vector.multi_reduction <add>, %113, %cst_55 [0] : vector<128x32xf32> to vector<32xf32>
    %117 = vector.shape_cast %116 : vector<32xf32> to vector<1x32xf32>
    %cst_56 = arith.constant 1.280000e+02 : f32
    %118 = vector.broadcast %cst_56 : f32 to vector<1x32xf32>
    %119 = arith.divf %117, %118 : vector<1x32xf32>
    %120 = vector.broadcast %119 : vector<1x32xf32> to vector<128x32xf32>
    %121 = arith.subf %113, %120 : vector<128x32xf32>
    %122 = arith.mulf %121, %121 : vector<128x32xf32>
    %cst_57 = arith.constant dense<0.000000e+00> : vector<32xf32>
    %123 = vector.multi_reduction <add>, %122, %cst_57 [0] : vector<128x32xf32> to vector<32xf32>
    %124 = vector.shape_cast %123 : vector<32xf32> to vector<1x32xf32>
    %cst_58 = arith.constant 1.280000e+02 : f32
    %125 = vector.broadcast %cst_58 : f32 to vector<1x32xf32>
    %126 = arith.divf %124, %125 : vector<1x32xf32>
    %cst_59 = arith.constant 9.99999974E-6 : f32
    %127 = vector.broadcast %cst_59 : f32 to vector<1x32xf32>
    %128 = arith.addf %126, %127 : vector<1x32xf32>
    %129 = math.rsqrt %128 : vector<1x32xf32>
    %130 = vector.broadcast %129 : vector<1x32xf32> to vector<128x32xf32>
    %131 = arith.mulf %121, %130 : vector<128x32xf32>
    %132 = vector.broadcast %114 : vector<1x32xf32> to vector<128x32xf32>
    %133 = arith.mulf %131, %132 : vector<128x32xf32>
    %134 = vector.broadcast %115 : vector<1x32xf32> to vector<128x32xf32>
    %135 = arith.addf %133, %134 : vector<128x32xf32>
    %136 = vector.shape_cast %135 : vector<128x32xf32> to vector<2x64x32xf32>
    %cst_60 = arith.constant dense<0.000000e+00> : vector<2x32xf32>
    %137 = vector.multi_reduction <add>, %136, %cst_60 [1] : vector<2x64x32xf32> to vector<2x32xf32>
    %cst_61 = arith.constant 6.400000e+01 : f32
    %138 = vector.broadcast %cst_61 : f32 to vector<2x32xf32>
    %139 = arith.divf %137, %138 : vector<2x32xf32>
    %c0_62 = arith.constant 0 : index
    %c0_63 = arith.constant 0 : index
    %140 = vector.load %arg10[%c0_62, %c0_63] : memref<32x2xf32, #tpu.memory_space<vmem>>, vector<32x2xf32>
    %cst_64 = arith.constant dense<0.000000e+00> : vector<2x2xf32>
    %141 = tpu.matmul %139, %140, %cst_64 {dimension_numbers = #tpu.dot_dimension_numbers<[1], [0], [0], [1], [0, 0, 1, 1], [], []>} : vector<2x32xf32>, vector<32x2xf32>, vector<2x2xf32> -> vector<2x2xf32>
    %cst_65 = arith.constant 0.000000e+00 : f32
    %142 = vector.broadcast %cst_65 : f32 to vector<2x2xf32>
    %143 = arith.maximumf %141, %142 : vector<2x2xf32>
    %c0_66 = arith.constant 0 : index
    %c0_67 = arith.constant 0 : index
    %144 = vector.load %arg11[%c0_66, %c0_67] : memref<2x32xf32, #tpu.memory_space<vmem>>, vector<2x32xf32>
    %cst_68 = arith.constant dense<0.000000e+00> : vector<2x32xf32>
    %145 = tpu.matmul %143, %144, %cst_68 {dimension_numbers = #tpu.dot_dimension_numbers<[1], [0], [0], [1], [0, 0, 1, 1], [], []>} : vector<2x2xf32>, vector<2x32xf32>, vector<2x32xf32> -> vector<2x32xf32>
    %cst_69 = arith.constant 0.000000e+00 : f32
    %146 = vector.broadcast %cst_69 : f32 to vector<2x32xf32>
    %147 = arith.subf %146, %145 : vector<2x32xf32>
    %148 = math.exp %147 : vector<2x32xf32>
    %cst_70 = arith.constant 1.000000e+00 : f32
    %149 = vector.broadcast %cst_70 : f32 to vector<2x32xf32>
    %150 = arith.addf %149, %148 : vector<2x32xf32>
    %cst_71 = arith.constant 1.000000e+00 : f32
    %151 = vector.broadcast %cst_71 : f32 to vector<2x32xf32>
    %152 = arith.divf %151, %150 : vector<2x32xf32>
    %153 = vector.shape_cast %152 : vector<2x32xf32> to vector<2x1x32xf32>
    %154 = vector.broadcast %153 : vector<2x1x32xf32> to vector<2x64x32xf32>
    %155 = arith.mulf %136, %154 : vector<2x64x32xf32>
    %156 = vector.shape_cast %155 : vector<2x64x32xf32> to vector<128x32xf32>
    %c0_72 = arith.constant 0 : index
    %c0_73 = arith.constant 0 : index
    %157 = vector.load %arg0[%c0_72, %c0_73] : memref<128x32xf32, #tpu.memory_space<vmem>>, vector<128x32xf32>
    %cst_74 = arith.constant 1.000000e-01 : f32
    %158 = vector.broadcast %cst_74 : f32 to vector<128x32xf32>
    %159 = arith.mulf %158, %156 : vector<128x32xf32>
    %160 = arith.addf %157, %159 : vector<128x32xf32>
    %c0_75 = arith.constant 0 : index
    %c0_76 = arith.constant 0 : index
    %161 = vector.load %arg12[%c0_75, %c0_76] : memref<128x32xf32, #tpu.memory_space<vmem>>, vector<128x32xf32>
    tpu.vector_store %arg12[%c0_75, %c0_76], %160 {strides = array<i32>} : memref<128x32xf32, #tpu.memory_space<vmem>>, vector<128x32xf32>,
    return
  }
}

</mosaic_0001>

<llo_original>
// kernel: tpu_custom_call.1
$region0: #{tpu_custom_call.1}
  #allocation0 [shape = 'u32[]', space=smem, size = 0x4, offset = 0x4, fixed_abs, tag = 'smem constant byte address 0x4 - core index']
  #allocation1 [shape = 'u32[144,128]{1,0:T(1,128)}', space=vmem, size = 0x12000, scoped, tag = 'internal scratch']
  %s0 = inlined_call_operand.vmem [shape: f32[128,32], index: 0, kind: input, shape index: {}]
  %s1 = inlined_call_operand.vmem [shape: bf16[32,64], index: 1, kind: input, shape index: {}]
  %s2 = inlined_call_operand.vmem [shape: f32[1,64], index: 2, kind: input, shape index: {}]
  %s3 = inlined_call_operand.vmem [shape: f32[1,64], index: 3, kind: input, shape index: {}]
  %s4 = inlined_call_operand.vmem [shape: bf16[5,64,64], index: 4, kind: input, shape index: {}]
  %s5 = inlined_call_operand.vmem [shape: f32[1,64], index: 5, kind: input, shape index: {}]
  %s6 = inlined_call_operand.vmem [shape: f32[1,64], index: 6, kind: input, shape index: {}]
  %s7 = inlined_call_operand.vmem [shape: bf16[64,32], index: 7, kind: input, shape index: {}]
  %s8 = inlined_call_operand.vmem [shape: f32[1,32], index: 8, kind: input, shape index: {}]
  %s9 = inlined_call_operand.vmem [shape: f32[1,32], index: 9, kind: input, shape index: {}]
  %s10 = inlined_call_operand.vmem [shape: f32[32,2], index: 10, kind: input, shape index: {}]
  %s11 = inlined_call_operand.vmem [shape: f32[2,32], index: 11, kind: input, shape index: {}]
  %s12 = inlined_call_operand.vmem [shape: f32[128,32], index: 12, kind: output, shape index: {}]
  %s13 = sld [smem:[#allocation0]]
  $region58: #{tpu_custom_call.1} parent=0
    _
  %s15 = ssub.s32 1, %s13
  %s16 = scalar_select 0, %s15, %s13
  // Predicated region
  $region2: #{tpu_custom_call.1} parent=0 // pred_check
    _
  $region3: #{tpu_custom_call.1} parent=0 // pred_check_branch
    %18 = sbr.rel (0) target = $region5
  $region4: #{tpu_custom_call.1} parent=0 // pred_region
    _
  $region5: #{tpu_custom_call.1} parent=0 // pred_fallthru
    _
  // Predicated region
  $region6: #{tpu_custom_call.1} parent=0 // pred_check
    _
  $region7: #{tpu_custom_call.1} parent=0 // pred_check_branch
    %20 = sbr.rel (0) target = $region9
  $region8: #{tpu_custom_call.1} parent=0 // pred_region
    _
  $region9: #{tpu_custom_call.1} parent=0 // pred_fallthru
    _
  // Predicated region
  $region10: #{tpu_custom_call.1} parent=0 // pred_check
    _
  $region11: #{tpu_custom_call.1} parent=0 // pred_check_branch
    %22 = sbr.rel (0) target = $region13
  $region12: #{tpu_custom_call.1} parent=0 // pred_region
    _
  $region13: #{tpu_custom_call.1} parent=0 // pred_fallthru
    _
  // Predicated region
  $region14: #{tpu_custom_call.1} parent=0 // pred_check
    _
  $region15: #{tpu_custom_call.1} parent=0 // pred_check_branch
    %24 = sbr.rel (0) target = $region17
  $region16: #{tpu_custom_call.1} parent=0 // pred_region
    _
  $region17: #{tpu_custom_call.1} parent=0 // pred_fallthru
    _
  // Predicated region
  $region18: #{tpu_custom_call.1} parent=0 // pred_check
    _
  $region19: #{tpu_custom_call.1} parent=0 // pred_check_branch
    %26 = sbr.rel (0) target = $region21
  $region20: #{tpu_custom_call.1} parent=0 // pred_region
    _
  $region21: #{tpu_custom_call.1} parent=0 // pred_fallthru
    _
  // Predicated region
  $region22: #{tpu_custom_call.1} parent=0 // pred_check
    _
  $region23: #{tpu_custom_call.1} parent=0 // pred_check_branch
    %28 = sbr.rel (0) target = $region25
  $region24: #{tpu_custom_call.1} parent=0 // pred_region
    _
  $region25: #{tpu_custom_call.1} parent=0 // pred_fallthru
    _
  // Predicated region
  $region26: #{tpu_custom_call.1} parent=0 // pred_check
    _
  $region27: #{tpu_custom_call.1} parent=0 // pred_check_branch
    %30 = sbr.rel (0) target = $region29
  $region28: #{tpu_custom_call.1} parent=0 // pred_region
    _
  $region29: #{tpu_custom_call.1} parent=0 // pred_fallthru
    _
  // Predicated region
  $region30: #{tpu_custom_call.1} parent=0 // pred_check
    _
  $region31: #{tpu_custom_call.1} parent=0 // pred_check_branch
    %32 = sbr.rel (0) target = $region33
  $region32: #{tpu_custom_call.1} parent=0 // pred_region
    _
  $region33: #{tpu_custom_call.1} parent=0 // pred_fallthru
    _
  // Predicated region
  $region34: #{tpu_custom_call.1} parent=0 // pred_check
    _
  $region35: #{tpu_custom_call.1} parent=0 // pred_check_branch
    %34 = sbr.rel (0) target = $region37
  $region36: #{tpu_custom_call.1} parent=0 // pred_region
    _
  $region37: #{tpu_custom_call.1} parent=0 // pred_fallthru
    _
  // Predicated region
  $region38: #{tpu_custom_call.1} parent=0 // pred_check
    _
  $region39: #{tpu_custom_call.1} parent=0 // pred_check_branch
    %36 = sbr.rel (0) target = $region41
  $region40: #{tpu_custom_call.1} parent=0 // pred_region
    _
  $region41: #{tpu_custom_call.1} parent=0 // pred_fallthru
    _
  // Predicated region
  $region42: #{tpu_custom_call.1} parent=0 // pred_check
    _
  $region43: #{tpu_custom_call.1} parent=0 // pred_check_branch
    %38 = sbr.rel (0) target = $region45
  $region44: #{tpu_custom_call.1} parent=0 // pred_region
    _
  $region45: #{tpu_custom_call.1} parent=0 // pred_fallthru
    _
  // Predicated region
  $region46: #{tpu_custom_call.1} parent=0 // pred_check
    _
  $region47: #{tpu_custom_call.1} parent=0 // pred_check_branch
    %40 = sbr.rel (0) target = $region49
  $region48: #{tpu_custom_call.1} parent=0 // pred_region
    _
  $region49: #{tpu_custom_call.1} parent=0 // pred_fallthru
    _
  %v42 = vld [vmem:[%s0] sm:$0xff]
  %v43 = vld [vmem:[%s0 + $0x8] sm:$0xff]
  %v44 = vld [vmem:[%s0 + $0x10] sm:$0xff]
  %v45 = vld [vmem:[%s0 + $0x18] sm:$0xff]
  %v46 = vld [vmem:[%s0 + $0x20] sm:$0xff]
  %v47 = vld [vmem:[%s0 + $0x28] sm:$0xff]
  %v48 = vld [vmem:[%s0 + $0x30] sm:$0xff]
  %v49 = vld [vmem:[%s0 + $0x38] sm:$0xff]
  %v50 = vld [vmem:[%s0 + $0x40] sm:$0xff]
  %v51 = vld [vmem:[%s0 + $0x48] sm:$0xff]
  %v52 = vld [vmem:[%s0 + $0x50] sm:$0xff]
  %v53 = vld [vmem:[%s0 + $0x58] sm:$0xff]
  %v54 = vld [vmem:[%s0 + $0x60] sm:$0xff]
  %v55 = vld [vmem:[%s0 + $0x68] sm:$0xff]
  %v56 = vld [vmem:[%s0 + $0x70] sm:$0xff]
  %v57 = vld [vmem:[%s0 + $0x78] sm:$0xff]
  %v58 = vpack.c.bf16 %v43, %v42
  %v59 = vpack.c.bf16 %v45, %v44
  %v60 = vpack.c.bf16 %v47, %v46
  %v61 = vpack.c.bf16 %v49, %v48
  %v62 = vpack.c.bf16 %v51, %v50
  %v63 = vpack.c.bf16 %v53, %v52
  %v64 = vpack.c.bf16 %v55, %v54
  %v65 = vpack.c.bf16 %v57, %v56
  %v66 = vld [vmem:[%s1] sm:$0xf]
  %v67 = vld [vmem:[%s1 + $0x4] sm:$0xf]
  %v68 = vld [vmem:[%s1 + $0x8] sm:$0xf]
  %v69 = vld [vmem:[%s1 + $0xc] sm:$0xf]
  %v74 = vunpack.c.l.b16 %v66
  %v75 = vunpack.c.l.b16 %v67
  %v76 = vunpack.c.l.b16 %v68
  %v77 = vunpack.c.l.b16 %v69
  %v78 = vpack.c.b16 %v75, %v74
  %v79 = vpack.c.b16 %v77, %v76
  %vm82 = vcmask 261120
  %v84 = vsel %vm82, %v58, 0
  %v87 = vsel %vm82, %v59, 0
  %v90 = vsel %vm82, %v60, 0
  %v93 = vsel %vm82, %v61, 0
  %v96 = vsel %vm82, %v62, 0
  %v99 = vsel %vm82, %v63, 0
  %v102 = vsel %vm82, %v64, 0
  %v105 = vsel %vm82, %v65, 0
  %107 = vmatprep.subr.bf16.mxu0 0
  %108 = vmatpush1.bf16.msra.mxu0 0
  %109 = vmatprep.subr.bf16.mxu0 0
  %110 = vmatpush1.bf16.msra.mxu0 0
  %111 = vmatprep.subr.bf16.mxu0 0
  %112 = vmatpush1.bf16.msra.mxu0 0
  %113 = vmatprep.subr.bf16.mxu0 0
  %114 = vmatpush1.bf16.msra.mxu0 0
  %115 = vmatprep.subr.bf16.mxu0 0
  %116 = vmatpush1.bf16.msra.mxu0 0
  %117 = vmatprep.subr.bf16.mxu0 0
  %118 = vmatpush1.bf16.msra.mxu0 0
  %119 = vmatprep.subr.bf16.mxu0 0
  %120 = vmatpush1.bf16.msra.mxu0 %v79
  %121 = vmatprep.subr.bf16.mxu0 0
  %122 = vmatpush1.bf16.msra.mxu0 %v78
  %123 = vmatprep.subr.bf16.mxu0 0
  %124 = vmatpush2.bf16.msra.mxu0 0
  %125 = vmatprep.subr.bf16.mxu0 0
  %126 = vmatpush2.bf16.msra.mxu0 0
  %127 = vmatprep.subr.bf16.mxu0 0
  %128 = vmatpush2.bf16.msra.mxu0 0
  %129 = vmatprep.subr.bf16.mxu0 0
  %130 = vmatpush2.bf16.msra.mxu0 0
  %131 = vmatprep.subr.bf16.mxu0 0
  %132 = vmatpush2.bf16.msra.mxu0 0
  %133 = vmatprep.subr.bf16.mxu0 0
  %134 = vmatpush2.bf16.msra.mxu0 0
  %135 = vmatprep.subr.bf16.mxu0 0
  %136 = vmatpush2.bf16.msra.mxu0 0
  %137 = vmatprep.subr.bf16.mxu0 0
  %138 = vmatpush2.bf16.msra.mxu0 0
  %139 = vmatprep.mubr.bf16.mxu0 0
  %140 = vmatmul.mubr.bf16.gmra.mxu0 %v84
  %v141 = vpop.f32.mrf.mxu0
  %v142 = vadd.f32 0.0, %v141
  %v143 = vpop.f32.mrf.mxu0
  %v144 = vpop.f32.mrf.mxu0
  %v145 = vadd.f32 0.0, %v144
  %v146 = vpop.f32.mrf.mxu0
  %147 = vmatprep.mubr.bf16.mxu0 0
  %148 = vmatmul.mubr.bf16.gmra.mxu0 %v87
  %v149 = vpop.f32.mrf.mxu0
  %v150 = vadd.f32 0.0, %v149
  %v151 = vpop.f32.mrf.mxu0
  %v152 = vpop.f32.mrf.mxu0
  %v153 = vadd.f32 0.0, %v152
  %v154 = vpop.f32.mrf.mxu0
  %155 = vmatprep.mubr.bf16.mxu0 0
  %156 = vmatmul.mubr.bf16.gmra.mxu0 %v90
  %v157 = vpop.f32.mrf.mxu0
  %v158 = vadd.f32 0.0, %v157
  %v159 = vpop.f32.mrf.mxu0
  %v160 = vpop.f32.mrf.mxu0
  %v161 = vadd.f32 0.0, %v160
  %v162 = vpop.f32.mrf.mxu0
  %163 = vmatprep.mubr.bf16.mxu0 0
  %164 = vmatmul.mubr.bf16.gmra.mxu0 %v93
  %v165 = vpop.f32.mrf.mxu0
  %v166 = vadd.f32 0.0, %v165
  %v167 = vpop.f32.mrf.mxu0
  %v168 = vpop.f32.mrf.mxu0
  %v169 = vadd.f32 0.0, %v168
  %v170 = vpop.f32.mrf.mxu0
  %171 = vmatprep.mubr.bf16.mxu0 0
  %172 = vmatmul.mubr.bf16.gmra.mxu0 %v96
  %v173 = vpop.f32.mrf.mxu0
  %v174 = vadd.f32 0.0, %v173
  %v175 = vpop.f32.mrf.mxu0
  %v176 = vpop.f32.mrf.mxu0
  %v177 = vadd.f32 0.0, %v176
  %v178 = vpop.f32.mrf.mxu0
  %179 = vmatprep.mubr.bf16.mxu0 0
  %180 = vmatmul.mubr.bf16.gmra.mxu0 %v99
  %v181 = vpop.f32.mrf.mxu0
  %v182 = vadd.f32 0.0, %v181
  %v183 = vpop.f32.mrf.mxu0
  %v184 = vpop.f32.mrf.mxu0
  %v185 = vadd.f32 0.0, %v184
  %v186 = vpop.f32.mrf.mxu0
  %187 = vmatprep.mubr.bf16.mxu0 0
  %188 = vmatmul.mubr.bf16.gmra.mxu0 %v102
  %v189 = vpop.f32.mrf.mxu0
  %v190 = vadd.f32 0.0, %v189
  %v191 = vpop.f32.mrf.mxu0
  %v192 = vpop.f32.mrf.mxu0
  %v193 = vadd.f32 0.0, %v192
  %v194 = vpop.f32.mrf.mxu0
  %195 = vmatprep.mubr.bf16.mxu0 0
  %196 = vmatmul.mubr.bf16.gmra.mxu0 %v105
  %v197 = vpop.f32.mrf.mxu0
  %v198 = vadd.f32 0.0, %v197
  %v199 = vpop.f32.mrf.mxu0
  %v200 = vpop.f32.mrf.mxu0
  %v201 = vadd.f32 0.0, %v200
  %v202 = vpop.f32.mrf.mxu0
  %203 = vdwg.mxu0
  %v204 = vld [vmem:[%s2] sm:$0x1]
  %v205 = vld [vmem:[%s3] sm:$0x1]
  %vm206 = vcmask 523264
  %v207 = vsel %vm206, %v142, 0.0
  %v208 = vsel %vm206, %v145, 0.0
  %v209 = vadd.f32 %v207, %v208
  %v210 = vsel %vm206, %v150, 0.0
  %v211 = vadd.f32 %v209, %v210
  %v212 = vsel %vm206, %v153, 0.0
  %v213 = vadd.f32 %v211, %v212
  %v214 = vsel %vm206, %v158, 0.0
  %v215 = vadd.f32 %v213, %v214
  %v216 = vsel %vm206, %v161, 0.0
  %v217 = vadd.f32 %v215, %v216
  %v218 = vsel %vm206, %v166, 0.0
  %v219 = vadd.f32 %v217, %v218
  %v220 = vsel %vm206, %v169, 0.0
  %v221 = vadd.f32 %v219, %v220
  %v222 = vsel %vm206, %v174, 0.0
  %v223 = vadd.f32 %v221, %v222
  %v224 = vsel %vm206, %v177, 0.0
  %v225 = vadd.f32 %v223, %v224
  %v226 = vsel %vm206, %v182, 0.0
  %v227 = vadd.f32 %v225, %v226
  %v228 = vsel %vm206, %v185, 0.0
  %v229 = vadd.f32 %v227, %v228
  %v230 = vsel %vm206, %v190, 0.0
  %v231 = vadd.f32 %v229, %v230
  %v232 = vsel %vm206, %v193, 0.0
  %v233 = vadd.f32 %v231, %v232
  %v234 = vsel %vm206, %v198, 0.0
  %v235 = vadd.f32 %v233, %v234
  %v236 = vsel %vm206, %v201, 0.0
  %v237 = vadd.f32 %v235, %v236
  %v238 = vrot.slane %v237, 4
  %v239 = vadd.f32 %v237, %v238
  %v240 = vrot.slane %v239, 2
  %v241 = vadd.f32 %v239, %v240
  %v242 = vrot.slane %v241, 1
  %v243 = vadd.f32 %v241, %v242
  %v244 = vrcp.pop 128.0
  %v245 = vmul.f32 %v243, %v244
  %v246 = vsub.f32 %v142, %v245
  %v247 = vsub.f32 %v145, %v245
  %v248 = vsub.f32 %v150, %v245
  %v249 = vsub.f32 %v153, %v245
  %v250 = vsub.f32 %v158, %v245
  %v251 = vsub.f32 %v161, %v245
  %v252 = vsub.f32 %v166, %v245
  %v253 = vsub.f32 %v169, %v245
  %v254 = vsub.f32 %v174, %v245
  %v255 = vsub.f32 %v177, %v245
  %v256 = vsub.f32 %v182, %v245
  %v257 = vsub.f32 %v185, %v245
  %v258 = vsub.f32 %v190, %v245
  %v259 = vsub.f32 %v193, %v245
  %v260 = vsub.f32 %v198, %v245
  %v261 = vsub.f32 %v201, %v245
  %v262 = vmul.f32 %v246, %v246
  %v263 = vmul.f32 %v247, %v247
  %v264 = vmul.f32 %v248, %v248
  %v265 = vmul.f32 %v249, %v249
  %v266 = vmul.f32 %v250, %v250
  %v267 = vmul.f32 %v251, %v251
  %v268 = vmul.f32 %v252, %v252
  %v269 = vmul.f32 %v253, %v253
  %v270 = vmul.f32 %v254, %v254
  %v271 = vmul.f32 %v255, %v255
  %v272 = vmul.f32 %v256, %v256
  %v273 = vmul.f32 %v257, %v257
  %v274 = vmul.f32 %v258, %v258
  %v275 = vmul.f32 %v259, %v259
  %v276 = vmul.f32 %v260, %v260
  %v277 = vmul.f32 %v261, %v261
  %v278 = vsel %vm206, %v262, 0.0
  %v279 = vsel %vm206, %v263, 0.0
  %v280 = vadd.f32 %v278, %v279
  %v281 = vsel %vm206, %v264, 0.0
  %v282 = vadd.f32 %v280, %v281
  %v283 = vsel %vm206, %v265, 0.0
  %v284 = vadd.f32 %v282, %v283
  %v285 = vsel %vm206, %v266, 0.0
  %v286 = vadd.f32 %v284, %v285
  %v287 = vsel %vm206, %v267, 0.0
  %v288 = vadd.f32 %v286, %v287
  %v289 = vsel %vm206, %v268, 0.0
  %v290 = vadd.f32 %v288, %v289
  %v291 = vsel %vm206, %v269, 0.0
  %v292 = vadd.f32 %v290, %v291
  %v293 = vsel %vm206, %v270, 0.0
  %v294 = vadd.f32 %v292, %v293
  %v295 = vsel %vm206, %v271, 0.0
  %v296 = vadd.f32 %v294, %v295
  %v297 = vsel %vm206, %v272, 0.0
  %v298 = vadd.f32 %v296, %v297
  %v299 = vsel %vm206, %v273, 0.0
  %v300 = vadd.f32 %v298, %v299
  %v301 = vsel %vm206, %v274, 0.0
  %v302 = vadd.f32 %v300, %v301
  %v303 = vsel %vm206, %v275, 0.0
  %v304 = vadd.f32 %v302, %v303
  %v305 = vsel %vm206, %v276, 0.0
  %v306 = vadd.f32 %v304, %v305
  %v307 = vsel %vm206, %v277, 0.0
  %v308 = vadd.f32 %v306, %v307
  %v309 = vrot.slane %v308, 4
  %v310 = vadd.f32 %v308, %v309
  %v311 = vrot.slane %v310, 2
  %v312 = vadd.f32 %v310, %v311
  %v313 = vrot.slane %v312, 1
  %v314 = vadd.f32 %v312, %v313
  %v315 = vmul.f32 %v314, %v244
  %v316 = vadd.f32 %v315, 1e-05
  %v317 = vrsqrt.pop %v316
  %v318 = vmul.f32 %v246, %v317
  %v319 = vmul.f32 %v247, %v317
  %v320 = vmul.f32 %v248, %v317
  %v321 = vmul.f32 %v249, %v317
  %v322 = vmul.f32 %v250, %v317
  %v323 = vmul.f32 %v251, %v317
  %v324 = vmul.f32 %v252, %v317
  %v325 = vmul.f32 %v253, %v317
  %v326 = vmul.f32 %v254, %v317
  %v327 = vmul.f32 %v255, %v317
  %v328 = vmul.f32 %v256, %v317
  %v329 = vmul.f32 %v257, %v317
  %v330 = vmul.f32 %v258, %v317
  %v331 = vmul.f32 %v259, %v317
  %v332 = vmul.f32 %v260, %v317
  %v333 = vmul.f32 %v261, %v317
  %v335 = vlaneseq
  %v336 = vshrl.u32 %v335, 7
  %v337 = vsub.s32 0, %v336
  %v338 = vrot.slane %v204, %v337
  %v340 = vmul.f32 %v318, %v338
  %v341 = vmul.f32 %v319, %v338
  %v342 = vmul.f32 %v320, %v338
  %v343 = vmul.f32 %v321, %v338
  %v344 = vmul.f32 %v322, %v338
  %v345 = vmul.f32 %v323, %v338
  %v346 = vmul.f32 %v324, %v338
  %v347 = vmul.f32 %v325, %v338
  %v348 = vmul.f32 %v326, %v338
  %v349 = vmul.f32 %v327, %v338
  %v350 = vmul.f32 %v328, %v338
  %v351 = vmul.f32 %v329, %v338
  %v352 = vmul.f32 %v330, %v338
  %v353 = vmul.f32 %v331, %v338
  %v354 = vmul.f32 %v332, %v338
  %v355 = vmul.f32 %v333, %v338
  %v357 = vlaneseq
  %v358 = vshrl.u32 %v357, 7
  %v359 = vsub.s32 0, %v358
  %v360 = vrot.slane %v205, %v359
  %v362 = vadd.f32 %v340, %v360
  %v363 = vadd.f32 %v341, %v360
  %v364 = vadd.f32 %v342, %v360
  %v365 = vadd.f32 %v343, %v360
  %v366 = vadd.f32 %v344, %v360
  %v367 = vadd.f32 %v345, %v360
  %v368 = vadd.f32 %v346, %v360
  %v369 = vadd.f32 %v347, %v360
  %v370 = vadd.f32 %v348, %v360
  %v371 = vadd.f32 %v349, %v360
  %v372 = vadd.f32 %v350, %v360
  %v373 = vadd.f32 %v351, %v360
  %v374 = vadd.f32 %v352, %v360
  %v375 = vadd.f32 %v353, %v360
  %v376 = vadd.f32 %v354, %v360
  %v377 = vadd.f32 %v355, %v360
  %v378 = vsub.f32 0.0, %v362
  %v379 = vsub.f32 0.0, %v363
  %v380 = vsub.f32 0.0, %v364
  %v381 = vsub.f32 0.0, %v365
  %v382 = vsub.f32 0.0, %v366
  %v383 = vsub.f32 0.0, %v367
  %v384 = vsub.f32 0.0, %v368
  %v385 = vsub.f32 0.0, %v369
  %v386 = vsub.f32 0.0, %v370
  %v387 = vsub.f32 0.0, %v371
  %v388 = vsub.f32 0.0, %v372
  %v389 = vsub.f32 0.0, %v373
  %v390 = vsub.f32 0.0, %v374
  %v391 = vsub.f32 0.0, %v375
  %v392 = vsub.f32 0.0, %v376
  %v393 = vsub.f32 0.0, %v377
  %v394 = vmul.f32 %v378, 1.442695
  %v395 = vpow.pop %v394
  %v396 = vmul.f32 %v379, 1.442695
  %v397 = vpow.pop %v396
  %v398 = vmul.f32 %v380, 1.442695
  %v399 = vpow.pop %v398
  %v400 = vmul.f32 %v381, 1.442695
  %v401 = vpow.pop %v400
  %v402 = vmul.f32 %v382, 1.442695
  %v403 = vpow.pop %v402
  %v404 = vmul.f32 %v383, 1.442695
  %v405 = vpow.pop %v404
  %v406 = vmul.f32 %v384, 1.442695
  %v407 = vpow.pop %v406
  %v408 = vmul.f32 %v385, 1.442695
  %v409 = vpow.pop %v408
  %v410 = vmul.f32 %v386, 1.442695
  %v411 = vpow.pop %v410
  %v412 = vmul.f32 %v387, 1.442695
  %v413 = vpow.pop %v412
  %v414 = vmul.f32 %v388, 1.442695
  %v415 = vpow.pop %v414
  %v416 = vmul.f32 %v389, 1.442695
  %v417 = vpow.pop %v416
  %v418 = vmul.f32 %v390, 1.442695
  %v419 = vpow.pop %v418
  %v420 = vmul.f32 %v391, 1.442695
  %v421 = vpow.pop %v420
  %v422 = vmul.f32 %v392, 1.442695
  %v423 = vpow.pop %v422
  %v424 = vmul.f32 %v393, 1.442695
  %v425 = vpow.pop %v424
  %v426 = vadd.f32 %v395, 1.0
  %v427 = vadd.f32 %v397, 1.0
  %v428 = vadd.f32 %v399, 1.0
  %v429 = vadd.f32 %v401, 1.0
  %v430 = vadd.f32 %v403, 1.0
  %v431 = vadd.f32 %v405, 1.0
  %v432 = vadd.f32 %v407, 1.0
  %v433 = vadd.f32 %v409, 1.0
  %v434 = vadd.f32 %v411, 1.0
  %v435 = vadd.f32 %v413, 1.0
  %v436 = vadd.f32 %v415, 1.0
  %v437 = vadd.f32 %v417, 1.0
  %v438 = vadd.f32 %v419, 1.0
  %v439 = vadd.f32 %v421, 1.0
  %v440 = vadd.f32 %v423, 1.0
  %v441 = vadd.f32 %v425, 1.0
  %v442 = vrcp.pop %v426
  %v443 = vrcp.pop %v427
  %v444 = vrcp.pop %v428
  %v445 = vrcp.pop %v429
  %v446 = vrcp.pop %v430
  %v447 = vrcp.pop %v431
  %v448 = vrcp.pop %v432
  %v449 = vrcp.pop %v433
  %v450 = vrcp.pop %v434
  %v451 = vrcp.pop %v435
  %v452 = vrcp.pop %v436
  %v453 = vrcp.pop %v437
  %v454 = vrcp.pop %v438
  %v455 = vrcp.pop %v439
  %v456 = vrcp.pop %v440
  %v457 = vrcp.pop %v441
  %v458 = vmul.f32 %v362, %v442
  %v459 = vmul.f32 %v363, %v443
  %v460 = vmul.f32 %v364, %v444
  %v461 = vmul.f32 %v365, %v445
  %v462 = vmul.f32 %v366, %v446
  %v463 = vmul.f32 %v367, %v447
  %v464 = vmul.f32 %v368, %v448
  %v465 = vmul.f32 %v369, %v449
  %v466 = vmul.f32 %v370, %v450
  %v467 = vmul.f32 %v371, %v451
  %v468 = vmul.f32 %v372, %v452
  %v469 = vmul.f32 %v373, %v453
  %v470 = vmul.f32 %v374, %v454
  %v471 = vmul.f32 %v375, %v455
  %v472 = vmul.f32 %v376, %v456
  %v473 = vmul.f32 %v377, %v457
  %v474 = vlaneseq
  %v475 = vshrl.u32 %v474, 7
  %v476 = vadd.s32 %v475, 8
  %v477 = vadd.s32 %v475, 16
  %v478 = vadd.s32 %v475, 24
  %v479 = vadd.s32 %v475, 32
  %v480 = vadd.s32 %v475, 40
  %v481 = vadd.s32 %v475, 48
  %v482 = vadd.s32 %v475, 56
  %v483 = vadd.s32 %v475, 64
  %v484 = vadd.s32 %v475, 72
  %v485 = vadd.s32 %v475, 80
  %v486 = vadd.s32 %v475, 88
  %v487 = vadd.s32 %v475, 96
  %v488 = vadd.s32 %v475, 104
  %v489 = vadd.s32 %v475, 112
  %v490 = vadd.s32 %v475, 120
  %vm491 = vcmp.lt.s32.totalorder %v475, 0
  %v492 = vsub.s32 0, %v475
  %v493 = vsel %vm491, %v492, %v475
  %v494 = vshrl.u32 %v493, 6
  %v495 = vand.u32 %v493, 63
  %v496 = vsub.s32 0, %v495
  %v497 = vsel %vm491, %v496, %v495
  %vm498 = vcmp.lt.s32.totalorder %v476, 0
  %v499 = vsub.s32 0, %v476
  %v500 = vsel %vm498, %v499, %v476
  %v501 = vshrl.u32 %v500, 6
  %v502 = vand.u32 %v500, 63
  %v503 = vsub.s32 0, %v502
  %v504 = vsel %vm498, %v503, %v502
  %vm505 = vcmp.lt.s32.totalorder %v477, 0
  %v506 = vsub.s32 0, %v477
  %v507 = vsel %vm505, %v506, %v477
  %v508 = vshrl.u32 %v507, 6
  %v509 = vand.u32 %v507, 63
  %v510 = vsub.s32 0, %v509
  %v511 = vsel %vm505, %v510, %v509
  %vm512 = vcmp.lt.s32.totalorder %v478, 0
  %v513 = vsub.s32 0, %v478
  %v514 = vsel %vm512, %v513, %v478
  %v515 = vshrl.u32 %v514, 6
  %v516 = vand.u32 %v514, 63
  %v517 = vsub.s32 0, %v516
  %v518 = vsel %vm512, %v517, %v516
  %vm519 = vcmp.lt.s32.totalorder %v479, 0
  %v520 = vsub.s32 0, %v479
  %v521 = vsel %vm519, %v520, %v479
  %v522 = vshrl.u32 %v521, 6
  %v523 = vand.u32 %v521, 63
  %v524 = vsub.s32 0, %v523
  %v525 = vsel %vm519, %v524, %v523
  %vm526 = vcmp.lt.s32.totalorder %v480, 0
  %v527 = vsub.s32 0, %v480
  %v528 = vsel %vm526, %v527, %v480
  %v529 = vshrl.u32 %v528, 6
  %v530 = vand.u32 %v528, 63
  %v531 = vsub.s32 0, %v530
  %v532 = vsel %vm526, %v531, %v530
  %vm533 = vcmp.lt.s32.totalorder %v481, 0
  %v534 = vsub.s32 0, %v481
  %v535 = vsel %vm533, %v534, %v481
  %v536 = vshrl.u32 %v535, 6
  %v537 = vand.u32 %v535, 63
  %v538 = vsub.s32 0, %v537
  %v539 = vsel %vm533, %v538, %v537
  %vm540 = vcmp.lt.s32.totalorder %v482, 0
  %v541 = vsub.s32 0, %v482
  %v542 = vsel %vm540, %v541, %v482
  %v543 = vshrl.u32 %v542, 6
  %v544 = vand.u32 %v542, 63
  %v545 = vsub.s32 0, %v544
  %v546 = vsel %vm540, %v545, %v544
  %vm547 = vcmp.lt.s32.totalorder %v483, 0
  %v548 = vsub.s32 0, %v483
  %v549 = vsel %vm547, %v548, %v483
  %v550 = vshrl.u32 %v549, 6
  %v551 = vand.u32 %v549, 63
  %v552 = vsub.s32 0, %v551
  %v553 = vsel %vm547, %v552, %v551
  %vm554 = vcmp.lt.s32.totalorder %v484, 0
  %v555 = vsub.s32 0, %v484
  %v556 = vsel %vm554, %v555, %v484
  %v557 = vshrl.u32 %v556, 6
  %v558 = vand.u32 %v556, 63
  %v559 = vsub.s32 0, %v558
  %v560 = vsel %vm554, %v559, %v558
  %vm561 = vcmp.lt.s32.totalorder %v485, 0
  %v562 = vsub.s32 0, %v485
  %v563 = vsel %vm561, %v562, %v485
  %v564 = vshrl.u32 %v563, 6
  %v565 = vand.u32 %v563, 63
  %v566 = vsub.s32 0, %v565
  %v567 = vsel %vm561, %v566, %v565
  %vm568 = vcmp.lt.s32.totalorder %v486, 0
  %v569 = vsub.s32 0, %v486
  %v570 = vsel %vm568, %v569, %v486
  %v571 = vshrl.u32 %v570, 6
  %v572 = vand.u32 %v570, 63
  %v573 = vsub.s32 0, %v572
  %v574 = vsel %vm568, %v573, %v572
  %vm575 = vcmp.lt.s32.totalorder %v487, 0
  %v576 = vsub.s32 0, %v487
  %v577 = vsel %vm575, %v576, %v487
  %v578 = vshrl.u32 %v577, 6
  %v579 = vand.u32 %v577, 63
  %v580 = vsub.s32 0, %v579
  %v581 = vsel %vm575, %v580, %v579
  %vm582 = vcmp.lt.s32.totalorder %v488, 0
  %v583 = vsub.s32 0, %v488
  %v584 = vsel %vm582, %v583, %v488
  %v585 = vshrl.u32 %v584, 6
  %v586 = vand.u32 %v584, 63
  %v587 = vsub.s32 0, %v586
  %v588 = vsel %vm582, %v587, %v586
  %vm589 = vcmp.lt.s32.totalorder %v489, 0
  %v590 = vsub.s32 0, %v489
  %v591 = vsel %vm589, %v590, %v489
  %v592 = vshrl.u32 %v591, 6
  %v593 = vand.u32 %v591, 63
  %v594 = vsub.s32 0, %v593
  %v595 = vsel %vm589, %v594, %v593
  %vm596 = vcmp.lt.s32.totalorder %v490, 0
  %v597 = vsub.s32 0, %v490
  %v598 = vsel %vm596, %v597, %v490
  %v599 = vshrl.u32 %v598, 6
  %v600 = vand.u32 %v598, 63
  %v601 = vsub.s32 0, %v600
  %v602 = vsel %vm596, %v601, %v600
  %v603 = vrot.slane %v458, 6
  %v604 = vrot.slane %v459, 6
  %v605 = vrot.slane %v460, 6
  %v606 = vrot.slane %v461, 6
  %v607 = vrot.slane %v462, 6
  %v608 = vrot.slane %v463, 6
  %v609 = vrot.slane %v464, 6
  %v610 = vrot.slane %v465, 6
  %v611 = vrot.slane %v466, 6
  %v612 = vrot.slane %v467, 6
  %v613 = vrot.slane %v468, 6
  %v614 = vrot.slane %v469, 6
  %v615 = vrot.slane %v470, 6
  %v616 = vrot.slane %v471, 6
  %v617 = vrot.slane %v472, 6
  %v618 = vrot.slane %v473, 6
  %vm619 = vcmp.lt.s32.totalorder %v475, 2
  %v620 = vsel %vm619, %v617, %v618
  %v621 = vsel %vm619, %v616, %v617
  %v622 = vsel %vm619, %v615, %v616
  %v623 = vsel %vm619, %v614, %v615
  %v624 = vsel %vm619, %v613, %v614
  %v625 = vsel %vm619, %v612, %v613
  %v626 = vsel %vm619, %v611, %v612
  %v627 = vsel %vm619, %v610, %v611
  %v628 = vsel %vm619, %v609, %v610
  %v629 = vsel %vm619, %v608, %v609
  %v630 = vsel %vm619, %v607, %v608
  %v631 = vsel %vm619, %v606, %v607
  %v632 = vsel %vm619, %v605, %v606
  %v633 = vsel %vm619, %v604, %v605
  %v634 = vsel %vm619, %v603, %v604
  %v635 = vsel %vm619, %v618, %v603
  %vm636 = vcmp.ge.s32.totalorder %v497, 2
  %vm637 = vcmp.ge.s32.totalorder %v504, 2
  %vm638 = vcmp.ge.s32.totalorder %v511, 2
  %vm639 = vcmp.ge.s32.totalorder %v518, 2
  %vm640 = vcmp.ge.s32.totalorder %v525, 2
  %vm641 = vcmp.ge.s32.totalorder %v532, 2
  %vm642 = vcmp.ge.s32.totalorder %v539, 2
  %vm643 = vcmp.ge.s32.totalorder %v546, 2
  %vm644 = vcmp.ge.s32.totalorder %v553, 2
  %vm645 = vcmp.ge.s32.totalorder %v560, 2
  %vm646 = vcmp.ge.s32.totalorder %v567, 2
  %vm647 = vcmp.ge.s32.totalorder %v574, 2
  %vm648 = vcmp.ge.s32.totalorder %v581, 2
  %vm649 = vcmp.ge.s32.totalorder %v588, 2
  %vm650 = vcmp.ge.s32.totalorder %v595, 2
  %vm651 = vcmp.ge.s32.totalorder %v602, 2
  %v652 = vsel %vm636, %v635, 0.0
  %v653 = vsel %vm637, %v634, 0.0
  %v654 = vsel %vm638, %v633, 0.0
  %v655 = vsel %vm639, %v632, 0.0
  %v656 = vsel %vm640, %v631, 0.0
  %v657 = vsel %vm641, %v630, 0.0
  %v658 = vsel %vm642, %v629, 0.0
  %v659 = vsel %vm643, %v628, 0.0
  %v660 = vsel %vm644, %v627, 0.0
  %v661 = vsel %vm645, %v626, 0.0
  %v662 = vsel %vm646, %v625, 0.0
  %v663 = vsel %vm647, %v624, 0.0
  %v664 = vsel %vm648, %v623, 0.0
  %v665 = vsel %vm649, %v622, 0.0
  %v666 = vsel %vm650, %v621, 0.0
  %v667 = vsel %vm651, %v620, 0.0
  %v668 = vpack.c.bf16 %v653, %v652
  %v669 = vpack.c.bf16 %v655, %v654
  %v670 = vpack.c.bf16 %v657, %v656
  %v671 = vpack.c.bf16 %v659, %v658
  %v672 = vpack.c.bf16 %v661, %v660
  %v673 = vpack.c.bf16 %v663, %v662
  %v674 = vpack.c.bf16 %v665, %v664
  %v675 = vpack.c.bf16 %v667, %v666
  %v676 = vld [vmem:[%s4] sm:$0xf]
  %v677 = vld [vmem:[%s4 + $0x4] sm:$0xf]
  %v678 = vld [vmem:[%s4 + $0x8] sm:$0xf]
  %v679 = vld [vmem:[%s4 + $0xc] sm:$0xf]
  %v680 = vld [vmem:[%s4 + $0x10] sm:$0xf]
  %v681 = vld [vmem:[%s4 + $0x14] sm:$0xf]
  %v682 = vld [vmem:[%s4 + $0x18] sm:$0xf]
  %v683 = vld [vmem:[%s4 + $0x1c] sm:$0xf]
  %v684 = vrot.slane %v458, 7
  %v685 = vrot.slane %v459, 7
  %v686 = vrot.slane %v460, 7
  %v687 = vrot.slane %v461, 7
  %v688 = vrot.slane %v462, 7
  %v689 = vrot.slane %v463, 7
  %v690 = vrot.slane %v464, 7
  %v691 = vrot.slane %v465, 7
  %v692 = vrot.slane %v466, 7
  %v693 = vrot.slane %v467, 7
  %v694 = vrot.slane %v468, 7
  %v695 = vrot.slane %v469, 7
  %v696 = vrot.slane %v470, 7
  %v697 = vrot.slane %v471, 7
  %v698 = vrot.slane %v472, 7
  %v699 = vrot.slane %v473, 7
  %vm700 = vcmp.lt.s32.totalorder %v475, 1
  %v701 = vsel %vm700, %v698, %v699
  %v702 = vsel %vm700, %v697, %v698
  %v703 = vsel %vm700, %v696, %v697
  %v704 = vsel %vm700, %v695, %v696
  %v705 = vsel %vm700, %v694, %v695
  %v706 = vsel %vm700, %v693, %v694
  %v707 = vsel %vm700, %v692, %v693
  %v708 = vsel %vm700, %v691, %v692
  %v709 = vsel %vm700, %v690, %v691
  %v710 = vsel %vm700, %v689, %v690
  %v711 = vsel %vm700, %v688, %v689
  %v712 = vsel %vm700, %v687, %v688
  %v713 = vsel %vm700, %v686, %v687
  %v714 = vsel %vm700, %v685, %v686
  %v715 = vsel %vm700, %v684, %v685
  %v716 = vsel %vm700, %v699, %v684
  %vm717 = vcmp.ge.s32.totalorder %v497, 1
  %vm718 = vcmp.ge.s32.totalorder %v504, 1
  %vm719 = vcmp.ge.s32.totalorder %v511, 1
  %vm720 = vcmp.ge.s32.totalorder %v518, 1
  %vm721 = vcmp.ge.s32.totalorder %v525, 1
  %vm722 = vcmp.ge.s32.totalorder %v532, 1
  %vm723 = vcmp.ge.s32.totalorder %v539, 1
  %vm724 = vcmp.ge.s32.totalorder %v546, 1
  %vm725 = vcmp.ge.s32.totalorder %v553, 1
  %vm726 = vcmp.ge.s32.totalorder %v560, 1
  %vm727 = vcmp.ge.s32.totalorder %v567, 1
  %vm728 = vcmp.ge.s32.totalorder %v574, 1
  %vm729 = vcmp.ge.s32.totalorder %v581, 1
  %vm730 = vcmp.ge.s32.totalorder %v588, 1
  %vm731 = vcmp.ge.s32.totalorder %v595, 1
  %vm732 = vcmp.ge.s32.totalorder %v602, 1
  %v733 = vsel %vm717, %v716, 0.0
  %v734 = vsel %vm718, %v715, 0.0
  %v735 = vsel %vm719, %v714, 0.0
  %v736 = vsel %vm720, %v713, 0.0
  %v737 = vsel %vm721, %v712, 0.0
  %v738 = vsel %vm722, %v711, 0.0
  %v739 = vsel %vm723, %v710, 0.0
  %v740 = vsel %vm724, %v709, 0.0
  %v741 = vsel %vm725, %v708, 0.0
  %v742 = vsel %vm726, %v707, 0.0
  %v743 = vsel %vm727, %v706, 0.0
  %v744 = vsel %vm728, %v705, 0.0
  %v745 = vsel %vm729, %v704, 0.0
  %v746 = vsel %vm730, %v703, 0.0
  %v747 = vsel %vm731, %v702, 0.0
  %v748 = vsel %vm732, %v701, 0.0
  %v749 = vpack.c.bf16 %v734, %v733
  %v750 = vpack.c.bf16 %v736, %v735
  %v751 = vpack.c.bf16 %v738, %v737
  %v752 = vpack.c.bf16 %v740, %v739
  %v753 = vpack.c.bf16 %v742, %v741
  %v754 = vpack.c.bf16 %v744, %v743
  %v755 = vpack.c.bf16 %v746, %v745
  %v756 = vpack.c.bf16 %v748, %v747
  %s757 = scalar_lea.vmem %s4, 32
  %v758 = vld [vmem:[%s757] sm:$0xf]
  %v759 = vld [vmem:[%s757 + $0x4] sm:$0xf]
  %v760 = vld [vmem:[%s757 + $0x8] sm:$0xf]
  %v761 = vld [vmem:[%s757 + $0xc] sm:$0xf]
  %v762 = vld [vmem:[%s757 + $0x10] sm:$0xf]
  %v763 = vld [vmem:[%s757 + $0x14] sm:$0xf]
  %v764 = vld [vmem:[%s757 + $0x18] sm:$0xf]
  %v765 = vld [vmem:[%s757 + $0x1c] sm:$0xf]
  %v774 = vunpack.c.l.b16 %v758
  %v775 = vunpack.c.l.b16 %v759
  %v776 = vunpack.c.l.b16 %v760
  %v777 = vunpack.c.l.b16 %v761
  %v778 = vunpack.c.l.b16 %v762
  %v779 = vunpack.c.l.b16 %v763
  %v780 = vunpack.c.l.b16 %v764
  %v781 = vunpack.c.l.b16 %v765
  %v782 = vpack.c.b16 %v775, %v774
  %v783 = vpack.c.b16 %v777, %v776
  %v784 = vpack.c.b16 %v779, %v778
  %v785 = vpack.c.b16 %v781, %v780
  %v791 = vsel %vm206, %v749, 0
  %v794 = vsel %vm206, %v750, 0
  %v797 = vsel %vm206, %v751, 0
  %v800 = vsel %vm206, %v752, 0
  %v803 = vsel %vm206, %v753, 0
  %v806 = vsel %vm206, %v754, 0
  %v809 = vsel %vm206, %v755, 0
  %v812 = vsel %vm206, %v756, 0
  %814 = vmatprep.subr.bf16.mxu0 0
  %815 = vmatpush1.bf16.msra.mxu0 0
  %816 = vmatprep.subr.bf16.mxu0 0
  %817 = vmatpush1.bf16.msra.mxu0 0
  %818 = vmatprep.subr.bf16.mxu0 0
  %819 = vmatpush1.bf16.msra.mxu0 0
  %820 = vmatprep.subr.bf16.mxu0 0
  %821 = vmatpush1.bf16.msra.mxu0 0
  %822 = vmatprep.subr.bf16.mxu0 0
  %823 = vmatpush1.bf16.msra.mxu0 %v785
  %824 = vmatprep.subr.bf16.mxu0 0
  %825 = vmatpush1.bf16.msra.mxu0 %v784
  %826 = vmatprep.subr.bf16.mxu0 0
  %827 = vmatpush1.bf16.msra.mxu0 %v783
  %828 = vmatprep.subr.bf16.mxu0 0
  %829 = vmatpush1.bf16.msra.mxu0 %v782
  %830 = vmatprep.subr.bf16.mxu0 0
  %831 = vmatpush2.bf16.msra.mxu0 0
  %832 = vmatprep.subr.bf16.mxu0 0
  %833 = vmatpush2.bf16.msra.mxu0 0
  %834 = vmatprep.subr.bf16.mxu0 0
  %835 = vmatpush2.bf16.msra.mxu0 0
  %836 = vmatprep.subr.bf16.mxu0 0
  %837 = vmatpush2.bf16.msra.mxu0 0
  %838 = vmatprep.subr.bf16.mxu0 0
  %839 = vmatpush2.bf16.msra.mxu0 0
  %840 = vmatprep.subr.bf16.mxu0 0
  %841 = vmatpush2.bf16.msra.mxu0 0
  %842 = vmatprep.subr.bf16.mxu0 0
  %843 = vmatpush2.bf16.msra.mxu0 0
  %844 = vmatprep.subr.bf16.mxu0 0
  %845 = vmatpush2.bf16.msra.mxu0 0
  %846 = vmatprep.mubr.bf16.mxu0 0
  %847 = vmatmul.mubr.bf16.gmra.mxu0 %v791
  %v848 = vpop.f32.mrf.mxu0
  %v849 = vadd.f32 0.0, %v848
  %v850 = vpop.f32.mrf.mxu0
  %v851 = vpop.f32.mrf.mxu0
  %v852 = vadd.f32 0.0, %v851
  %v853 = vpop.f32.mrf.mxu0
  %854 = vmatprep.mubr.bf16.mxu0 0
  %855 = vmatmul.mubr.bf16.gmra.mxu0 %v794
  %v856 = vpop.f32.mrf.mxu0
  %v857 = vadd.f32 0.0, %v856
  %v858 = vpop.f32.mrf.mxu0
  %v859 = vpop.f32.mrf.mxu0
  %v860 = vadd.f32 0.0, %v859
  %v861 = vpop.f32.mrf.mxu0
  %862 = vmatprep.mubr.bf16.mxu0 0
  %863 = vmatmul.mubr.bf16.gmra.mxu0 %v797
  %v864 = vpop.f32.mrf.mxu0
  %v865 = vadd.f32 0.0, %v864
  %v866 = vpop.f32.mrf.mxu0
  %v867 = vpop.f32.mrf.mxu0
  %v868 = vadd.f32 0.0, %v867
  %v869 = vpop.f32.mrf.mxu0
  %870 = vmatprep.mubr.bf16.mxu0 0
  %871 = vmatmul.mubr.bf16.gmra.mxu0 %v800
  %v872 = vpop.f32.mrf.mxu0
  %v873 = vadd.f32 0.0, %v872
  %v874 = vpop.f32.mrf.mxu0
  %v875 = vpop.f32.mrf.mxu0
  %v876 = vadd.f32 0.0, %v875
  %v877 = vpop.f32.mrf.mxu0
  %878 = vmatprep.mubr.bf16.mxu0 0
  %879 = vmatmul.mubr.bf16.gmra.mxu0 %v803
  %v880 = vpop.f32.mrf.mxu0
  %v881 = vadd.f32 0.0, %v880
  %v882 = vpop.f32.mrf.mxu0
  %v883 = vpop.f32.mrf.mxu0
  %v884 = vadd.f32 0.0, %v883
  %v885 = vpop.f32.mrf.mxu0
  %886 = vmatprep.mubr.bf16.mxu0 0
  %887 = vmatmul.mubr.bf16.gmra.mxu0 %v806
  %v888 = vpop.f32.mrf.mxu0
  %v889 = vadd.f32 0.0, %v888
  %v890 = vpop.f32.mrf.mxu0
  %v891 = vpop.f32.mrf.mxu0
  %v892 = vadd.f32 0.0, %v891
  %v893 = vpop.f32.mrf.mxu0
  %894 = vmatprep.mubr.bf16.mxu0 0
  %895 = vmatmul.mubr.bf16.gmra.mxu0 %v809
  %v896 = vpop.f32.mrf.mxu0
  %v897 = vadd.f32 0.0, %v896
  %v898 = vpop.f32.mrf.mxu0
  %v899 = vpop.f32.mrf.mxu0
  %v900 = vadd.f32 0.0, %v899
  %v901 = vpop.f32.mrf.mxu0
  %902 = vmatprep.mubr.bf16.mxu0 0
  %903 = vmatmul.mubr.bf16.gmra.mxu0 %v812
  %v904 = vpop.f32.mrf.mxu0
  %v905 = vadd.f32 0.0, %v904
  %v906 = vpop.f32.mrf.mxu0
  %v907 = vpop.f32.mrf.mxu0
  %v908 = vadd.f32 0.0, %v907
  %v909 = vpop.f32.mrf.mxu0
  %910 = vdwg.mxu0
  %v919 = vunpack.c.l.b16 %v676
  %v920 = vunpack.c.l.b16 %v677
  %v921 = vunpack.c.l.b16 %v678
  %v922 = vunpack.c.l.b16 %v679
  %v923 = vunpack.c.l.b16 %v680
  %v924 = vunpack.c.l.b16 %v681
  %v925 = vunpack.c.l.b16 %v682
  %v926 = vunpack.c.l.b16 %v683
  %v927 = vpack.c.b16 %v920, %v919
  %v928 = vpack.c.b16 %v922, %v921
  %v929 = vpack.c.b16 %v924, %v923
  %v930 = vpack.c.b16 %v926, %v925
  %v936 = vsel %vm206, %v668, 0
  %v939 = vsel %vm206, %v669, 0
  %v942 = vsel %vm206, %v670, 0
  %v945 = vsel %vm206, %v671, 0
  %v948 = vsel %vm206, %v672, 0
  %v951 = vsel %vm206, %v673, 0
  %v954 = vsel %vm206, %v674, 0
  %v957 = vsel %vm206, %v675, 0
  %959 = vmatprep.subr.bf16.mxu0 0
  %960 = vmatpush1.bf16.msra.mxu0 0
  %961 = vmatprep.subr.bf16.mxu0 0
  %962 = vmatpush1.bf16.msra.mxu0 0
  %963 = vmatprep.subr.bf16.mxu0 0
  %964 = vmatpush1.bf16.msra.mxu0 0
  %965 = vmatprep.subr.bf16.mxu0 0
  %966 = vmatpush1.bf16.msra.mxu0 0
  %967 = vmatprep.subr.bf16.mxu0 0
  %968 = vmatpush1.bf16.msra.mxu0 %v930
  %969 = vmatprep.subr.bf16.mxu0 0
  %970 = vmatpush1.bf16.msra.mxu0 %v929
  %971 = vmatprep.subr.bf16.mxu0 0
  %972 = vmatpush1.bf16.msra.mxu0 %v928
  %973 = vmatprep.subr.bf16.mxu0 0
  %974 = vmatpush1.bf16.msra.mxu0 %v927
  %975 = vmatprep.subr.bf16.mxu0 0
  %976 = vmatpush2.bf16.msra.mxu0 0
  %977 = vmatprep.subr.bf16.mxu0 0
  %978 = vmatpush2.bf16.msra.mxu0 0
  %979 = vmatprep.subr.bf16.mxu0 0
  %980 = vmatpush2.bf16.msra.mxu0 0
  %981 = vmatprep.subr.bf16.mxu0 0
  %982 = vmatpush2.bf16.msra.mxu0 0
  %983 = vmatprep.subr.bf16.mxu0 0
  %984 = vmatpush2.bf16.msra.mxu0 0
  %985 = vmatprep.subr.bf16.mxu0 0
  %986 = vmatpush2.bf16.msra.mxu0 0
  %987 = vmatprep.subr.bf16.mxu0 0
  %988 = vmatpush2.bf16.msra.mxu0 0
  %989 = vmatprep.subr.bf16.mxu0 0
  %990 = vmatpush2.bf16.msra.mxu0 0
  %991 = vmatprep.mubr.bf16.mxu0 0
  %992 = vmatmul.mubr.bf16.gmra.mxu0 %v936
  %v993 = vpop.f32.mrf.mxu0
  %v994 = vadd.f32 %v849, %v993
  %v995 = vpop.f32.mrf.mxu0
  %v996 = vpop.f32.mrf.mxu0
  %v997 = vadd.f32 %v852, %v996
  %v998 = vpop.f32.mrf.mxu0
  %999 = vmatprep.mubr.bf16.mxu0 0
  %1000 = vmatmul.mubr.bf16.gmra.mxu0 %v939
  %v1001 = vpop.f32.mrf.mxu0
  %v1002 = vadd.f32 %v857, %v1001
  %v1003 = vpop.f32.mrf.mxu0
  %v1004 = vpop.f32.mrf.mxu0
  %v1005 = vadd.f32 %v860, %v1004
  %v1006 = vpop.f32.mrf.mxu0
  %1007 = vmatprep.mubr.bf16.mxu0 0
  %1008 = vmatmul.mubr.bf16.gmra.mxu0 %v942
  %v1009 = vpop.f32.mrf.mxu0
  %v1010 = vadd.f32 %v865, %v1009
  %v1011 = vpop.f32.mrf.mxu0
  %v1012 = vpop.f32.mrf.mxu0
  %v1013 = vadd.f32 %v868, %v1012
  %v1014 = vpop.f32.mrf.mxu0
  %1015 = vmatprep.mubr.bf16.mxu0 0
  %1016 = vmatmul.mubr.bf16.gmra.mxu0 %v945
  %v1017 = vpop.f32.mrf.mxu0
  %v1018 = vadd.f32 %v873, %v1017
  %v1019 = vpop.f32.mrf.mxu0
  %v1020 = vpop.f32.mrf.mxu0
  %v1021 = vadd.f32 %v876, %v1020
  %v1022 = vpop.f32.mrf.mxu0
  %1023 = vmatprep.mubr.bf16.mxu0 0
  %1024 = vmatmul.mubr.bf16.gmra.mxu0 %v948
  %v1025 = vpop.f32.mrf.mxu0
  %v1026 = vadd.f32 %v881, %v1025
  %v1027 = vpop.f32.mrf.mxu0
  %v1028 = vpop.f32.mrf.mxu0
  %v1029 = vadd.f32 %v884, %v1028
  %v1030 = vpop.f32.mrf.mxu0
  %1031 = vmatprep.mubr.bf16.mxu0 0
  %1032 = vmatmul.mubr.bf16.gmra.mxu0 %v951
  %v1033 = vpop.f32.mrf.mxu0
  %v1034 = vadd.f32 %v889, %v1033
  %v1035 = vpop.f32.mrf.mxu0
  %v1036 = vpop.f32.mrf.mxu0
  %v1037 = vadd.f32 %v892, %v1036
  %v1038 = vpop.f32.mrf.mxu0
  %1039 = vmatprep.mubr.bf16.mxu0 0
  %1040 = vmatmul.mubr.bf16.gmra.mxu0 %v954
  %v1041 = vpop.f32.mrf.mxu0
  %v1042 = vadd.f32 %v897, %v1041
  %v1043 = vpop.f32.mrf.mxu0
  %v1044 = vpop.f32.mrf.mxu0
  %v1045 = vadd.f32 %v900, %v1044
  %v1046 = vpop.f32.mrf.mxu0
  %1047 = vmatprep.mubr.bf16.mxu0 0
  %1048 = vmatmul.mubr.bf16.gmra.mxu0 %v957
  %v1049 = vpop.f32.mrf.mxu0
  %v1050 = vadd.f32 %v905, %v1049
  %v1051 = vpop.f32.mrf.mxu0
  %v1052 = vpop.f32.mrf.mxu0
  %v1053 = vadd.f32 %v908, %v1052
  %v1054 = vpop.f32.mrf.mxu0
  %1055 = vdwg.mxu0
  %v1056 = vpack.c.bf16 %v459, %v458
  %v1057 = vpack.c.bf16 %v461, %v460
  %v1058 = vpack.c.bf16 %v463, %v462
  %v1059 = vpack.c.bf16 %v465, %v464
  %v1060 = vpack.c.bf16 %v467, %v466
  %v1061 = vpack.c.bf16 %v469, %v468
  %v1062 = vpack.c.bf16 %v471, %v470
  %v1063 = vpack.c.bf16 %v473, %v472
  %s1064 = scalar_lea.vmem %s4, 64
  %v1065 = vld [vmem:[%s1064] sm:$0xf]
  %v1066 = vld [vmem:[%s1064 + $0x4] sm:$0xf]
  %v1067 = vld [vmem:[%s1064 + $0x8] sm:$0xf]
  %v1068 = vld [vmem:[%s1064 + $0xc] sm:$0xf]
  %v1069 = vld [vmem:[%s1064 + $0x10] sm:$0xf]
  %v1070 = vld [vmem:[%s1064 + $0x14] sm:$0xf]
  %v1071 = vld [vmem:[%s1064 + $0x18] sm:$0xf]
  %v1072 = vld [vmem:[%s1064 + $0x1c] sm:$0xf]
  %v1081 = vunpack.c.l.b16 %v1065
  %v1082 = vunpack.c.l.b16 %v1066
  %v1083 = vunpack.c.l.b16 %v1067
  %v1084 = vunpack.c.l.b16 %v1068
  %v1085 = vunpack.c.l.b16 %v1069
  %v1086 = vunpack.c.l.b16 %v1070
  %v1087 = vunpack.c.l.b16 %v1071
  %v1088 = vunpack.c.l.b16 %v1072
  %v1089 = vpack.c.b16 %v1082, %v1081
  %v1090 = vpack.c.b16 %v1084, %v1083
  %v1091 = vpack.c.b16 %v1086, %v1085
  %v1092 = vpack.c.b16 %v1088, %v1087
  %v1098 = vsel %vm206, %v1056, 0
  %v1101 = vsel %vm206, %v1057, 0
  %v1104 = vsel %vm206, %v1058, 0
  %v1107 = vsel %vm206, %v1059, 0
  %v1110 = vsel %vm206, %v1060, 0
  %v1113 = vsel %vm206, %v1061, 0
  %v1116 = vsel %vm206, %v1062, 0
  %v1119 = vsel %vm206, %v1063, 0
  %1121 = vmatprep.subr.bf16.mxu0 0
  %1122 = vmatpush1.bf16.msra.mxu0 0
  %1123 = vmatprep.subr.bf16.mxu0 0
  %1124 = vmatpush1.bf16.msra.mxu0 0
  %1125 = vmatprep.subr.bf16.mxu0 0
  %1126 = vmatpush1.bf16.msra.mxu0 0
  %1127 = vmatprep.subr.bf16.mxu0 0
  %1128 = vmatpush1.bf16.msra.mxu0 0
  %1129 = vmatprep.subr.bf16.mxu0 0
  %1130 = vmatpush1.bf16.msra.mxu0 %v1092
  %1131 = vmatprep.subr.bf16.mxu0 0
  %1132 = vmatpush1.bf16.msra.mxu0 %v1091
  %1133 = vmatprep.subr.bf16.mxu0 0
  %1134 = vmatpush1.bf16.msra.mxu0 %v1090
  %1135 = vmatprep.subr.bf16.mxu0 0
  %1136 = vmatpush1.bf16.msra.mxu0 %v1089
  %1137 = vmatprep.subr.bf16.mxu0 0
  %1138 = vmatpush2.bf16.msra.mxu0 0
  %1139 = vmatprep.subr.bf16.mxu0 0
  %1140 = vmatpush2.bf16.msra.mxu0 0
  %1141 = vmatprep.subr.bf16.mxu0 0
  %1142 = vmatpush2.bf16.msra.mxu0 0
  %1143 = vmatprep.subr.bf16.mxu0 0
  %1144 = vmatpush2.bf16.msra.mxu0 0
  %1145 = vmatprep.subr.bf16.mxu0 0
  %1146 = vmatpush2.bf16.msra.mxu0 0
  %1147 = vmatprep.subr.bf16.mxu0 0
  %1148 = vmatpush2.bf16.msra.mxu0 0
  %1149 = vmatprep.subr.bf16.mxu0 0
  %1150 = vmatpush2.bf16.msra.mxu0 0
  %1151 = vmatprep.subr.bf16.mxu0 0
  %1152 = vmatpush2.bf16.msra.mxu0 0
  %1153 = vmatprep.mubr.bf16.mxu0 0
  %1154 = vmatmul.mubr.bf16.gmra.mxu0 %v1098
  %v1155 = vpop.f32.mrf.mxu0
  %v1156 = vadd.f32 0.0, %v1155
  %v1157 = vpop.f32.mrf.mxu0
  %v1158 = vpop.f32.mrf.mxu0
  %v1159 = vadd.f32 0.0, %v1158
  %v1160 = vpop.f32.mrf.mxu0
  %1161 = vmatprep.mubr.bf16.mxu0 0
  %1162 = vmatmul.mubr.bf16.gmra.mxu0 %v1101
  %v1163 = vpop.f32.mrf.mxu0
  %v1164 = vadd.f32 0.0, %v1163
  %v1165 = vpop.f32.mrf.mxu0
  %v1166 = vpop.f32.mrf.mxu0
  %v1167 = vadd.f32 0.0, %v1166
  %v1168 = vpop.f32.mrf.mxu0
  %1169 = vmatprep.mubr.bf16.mxu0 0
  %1170 = vmatmul.mubr.bf16.gmra.mxu0 %v1104
  %v1171 = vpop.f32.mrf.mxu0
  %v1172 = vadd.f32 0.0, %v1171
  %v1173 = vpop.f32.mrf.mxu0
  %v1174 = vpop.f32.mrf.mxu0
  %v1175 = vadd.f32 0.0, %v1174
  %v1176 = vpop.f32.mrf.mxu0
  %1177 = vmatprep.mubr.bf16.mxu0 0
  %1178 = vmatmul.mubr.bf16.gmra.mxu0 %v1107
  %v1179 = vpop.f32.mrf.mxu0
  %v1180 = vadd.f32 0.0, %v1179
  %v1181 = vpop.f32.mrf.mxu0
  %v1182 = vpop.f32.mrf.mxu0
  %v1183 = vadd.f32 0.0, %v1182
  %v1184 = vpop.f32.mrf.mxu0
  %1185 = vmatprep.mubr.bf16.mxu0 0
  %1186 = vmatmul.mubr.bf16.gmra.mxu0 %v1110
  %v1187 = vpop.f32.mrf.mxu0
  %v1188 = vadd.f32 0.0, %v1187
  %v1189 = vpop.f32.mrf.mxu0
  %v1190 = vpop.f32.mrf.mxu0
  %v1191 = vadd.f32 0.0, %v1190
  %v1192 = vpop.f32.mrf.mxu0
  %1193 = vmatprep.mubr.bf16.mxu0 0
  %1194 = vmatmul.mubr.bf16.gmra.mxu0 %v1113
  %v1195 = vpop.f32.mrf.mxu0
  %v1196 = vadd.f32 0.0, %v1195
  %v1197 = vpop.f32.mrf.mxu0
  %v1198 = vpop.f32.mrf.mxu0
  %v1199 = vadd.f32 0.0, %v1198
  %v1200 = vpop.f32.mrf.mxu0
  %1201 = vmatprep.mubr.bf16.mxu0 0
  %1202 = vmatmul.mubr.bf16.gmra.mxu0 %v1116
  %v1203 = vpop.f32.mrf.mxu0
  %v1204 = vadd.f32 0.0, %v1203
  %v1205 = vpop.f32.mrf.mxu0
  %v1206 = vpop.f32.mrf.mxu0
  %v1207 = vadd.f32 0.0, %v1206
  %v1208 = vpop.f32.mrf.mxu0
  %1209 = vmatprep.mubr.bf16.mxu0 0
  %1210 = vmatmul.mubr.bf16.gmra.mxu0 %v1119
  %v1211 = vpop.f32.mrf.mxu0
  %v1212 = vadd.f32 0.0, %v1211
  %v1213 = vpop.f32.mrf.mxu0
  %v1214 = vpop.f32.mrf.mxu0
  %v1215 = vadd.f32 0.0, %v1214
  %v1216 = vpop.f32.mrf.mxu0
  %1217 = vdwg.mxu0
  %v1218 = vadd.f32 %v994, %v1156
  %v1219 = vadd.f32 %v997, %v1159
  %v1220 = vadd.f32 %v1002, %v1164
  %v1221 = vadd.f32 %v1005, %v1167
  %v1222 = vadd.f32 %v1010, %v1172
  %v1223 = vadd.f32 %v1013, %v1175
  %v1224 = vadd.f32 %v1018, %v1180
  %v1225 = vadd.f32 %v1021, %v1183
  %v1226 = vadd.f32 %v1026, %v1188
  %v1227 = vadd.f32 %v1029, %v1191
  %v1228 = vadd.f32 %v1034, %v1196
  %v1229 = vadd.f32 %v1037, %v1199
  %v1230 = vadd.f32 %v1042, %v1204
  %v1231 = vadd.f32 %v1045, %v1207
  %v1232 = vadd.f32 %v1050, %v1212
  %v1233 = vadd.f32 %v1053, %v1215
  %v1234 = vrot.slane %v458, 1
  %v1235 = vrot.slane %v459, 1
  %v1236 = vrot.slane %v460, 1
  %v1237 = vrot.slane %v461, 1
  %v1238 = vrot.slane %v462, 1
  %v1239 = vrot.slane %v463, 1
  %v1240 = vrot.slane %v464, 1
  %v1241 = vrot.slane %v465, 1
  %v1242 = vrot.slane %v466, 1
  %v1243 = vrot.slane %v467, 1
  %v1244 = vrot.slane %v468, 1
  %v1245 = vrot.slane %v469, 1
  %v1246 = vrot.slane %v470, 1
  %v1247 = vrot.slane %v471, 1
  %v1248 = vrot.slane %v472, 1
  %v1249 = vrot.slane %v473, 1
  %vm1250 = vcmp.lt.s32.totalorder %v475, 7
  %v1251 = vsel %vm1250, %v1248, %v1249
  %v1252 = vsel %vm1250, %v1247, %v1248
  %v1253 = vsel %vm1250, %v1246, %v1247
  %v1254 = vsel %vm1250, %v1245, %v1246
  %v1255 = vsel %vm1250, %v1244, %v1245
  %v1256 = vsel %vm1250, %v1243, %v1244
  %v1257 = vsel %vm1250, %v1242, %v1243
  %v1258 = vsel %vm1250, %v1241, %v1242
  %v1259 = vsel %vm1250, %v1240, %v1241
  %v1260 = vsel %vm1250, %v1239, %v1240
  %v1261 = vsel %vm1250, %v1238, %v1239
  %v1262 = vsel %vm1250, %v1237, %v1238
  %v1263 = vsel %vm1250, %v1236, %v1237
  %v1264 = vsel %vm1250, %v1235, %v1236
  %v1265 = vsel %vm1250, %v1234, %v1235
  %v1266 = vsel %vm1250, %v1249, %v1234
  %vm1267 = vcmp.lt.s32.totalorder %v497, 63
  %vm1268 = vcmp.lt.s32.totalorder %v504, 63
  %vm1269 = vcmp.lt.s32.totalorder %v511, 63
  %vm1270 = vcmp.lt.s32.totalorder %v518, 63
  %vm1271 = vcmp.lt.s32.totalorder %v525, 63
  %vm1272 = vcmp.lt.s32.totalorder %v532, 63
  %vm1273 = vcmp.lt.s32.totalorder %v539, 63
  %vm1274 = vcmp.lt.s32.totalorder %v546, 63
  %vm1275 = vcmp.lt.s32.totalorder %v553, 63
  %vm1276 = vcmp.lt.s32.totalorder %v560, 63
  %vm1277 = vcmp.lt.s32.totalorder %v567, 63
  %vm1278 = vcmp.lt.s32.totalorder %v574, 63
  %vm1279 = vcmp.lt.s32.totalorder %v581, 63
  %vm1280 = vcmp.lt.s32.totalorder %v588, 63
  %vm1281 = vcmp.lt.s32.totalorder %v595, 63
  %vm1282 = vcmp.lt.s32.totalorder %v602, 63
  %v1283 = vsel %vm1267, %v1265, 0.0
  %v1284 = vsel %vm1268, %v1264, 0.0
  %v1285 = vsel %vm1269, %v1263, 0.0
  %v1286 = vsel %vm1270, %v1262, 0.0
  %v1287 = vsel %vm1271, %v1261, 0.0
  %v1288 = vsel %vm1272, %v1260, 0.0
  %v1289 = vsel %vm1273, %v1259, 0.0
  %v1290 = vsel %vm1274, %v1258, 0.0
  %v1291 = vsel %vm1275, %v1257, 0.0
  %v1292 = vsel %vm1276, %v1256, 0.0
  %v1293 = vsel %vm1277, %v1255, 0.0
  %v1294 = vsel %vm1278, %v1254, 0.0
  %v1295 = vsel %vm1279, %v1253, 0.0
  %v1296 = vsel %vm1280, %v1252, 0.0
  %v1297 = vsel %vm1281, %v1251, 0.0
  %v1298 = vsel %vm1282, %v1266, 0.0
  %v1299 = vpack.c.bf16 %v1284, %v1283
  %v1300 = vpack.c.bf16 %v1286, %v1285
  %v1301 = vpack.c.bf16 %v1288, %v1287
  %v1302 = vpack.c.bf16 %v1290, %v1289
  %v1303 = vpack.c.bf16 %v1292, %v1291
  %v1304 = vpack.c.bf16 %v1294, %v1293
  %v1305 = vpack.c.bf16 %v1296, %v1295
  %v1306 = vpack.c.bf16 %v1298, %v1297
  %s1307 = scalar_lea.vmem %s4, 96
  %v1308 = vld [vmem:[%s1307] sm:$0xf]
  %v1309 = vld [vmem:[%s1307 + $0x4] sm:$0xf]
  %v1310 = vld [vmem:[%s1307 + $0x8] sm:$0xf]
  %v1311 = vld [vmem:[%s1307 + $0xc] sm:$0xf]
  %v1312 = vld [vmem:[%s1307 + $0x10] sm:$0xf]
  %v1313 = vld [vmem:[%s1307 + $0x14] sm:$0xf]
  %v1314 = vld [vmem:[%s1307 + $0x18] sm:$0xf]
  %v1315 = vld [vmem:[%s1307 + $0x1c] sm:$0xf]
  %v1324 = vunpack.c.l.b16 %v1308
  %v1325 = vunpack.c.l.b16 %v1309
  %v1326 = vunpack.c.l.b16 %v1310
  %v1327 = vunpack.c.l.b16 %v1311
  %v1328 = vunpack.c.l.b16 %v1312
  %v1329 = vunpack.c.l.b16 %v1313
  %v1330 = vunpack.c.l.b16 %v1314
  %v1331 = vunpack.c.l.b16 %v1315
  %v1332 = vpack.c.b16 %v1325, %v1324
  %v1333 = vpack.c.b16 %v1327, %v1326
  %v1334 = vpack.c.b16 %v1329, %v1328
  %v1335 = vpack.c.b16 %v1331, %v1330
  %v1341 = vsel %vm206, %v1299, 0
  %v1344 = vsel %vm206, %v1300, 0
  %v1347 = vsel %vm206, %v1301, 0
  %v1350 = vsel %vm206, %v1302, 0
  %v1353 = vsel %vm206, %v1303, 0
  %v1356 = vsel %vm206, %v1304, 0
  %v1359 = vsel %vm206, %v1305, 0
  %v1362 = vsel %vm206, %v1306, 0
  %1364 = vmatprep.subr.bf16.mxu0 0
  %1365 = vmatpush1.bf16.msra.mxu0 0
  %1366 = vmatprep.subr.bf16.mxu0 0
  %1367 = vmatpush1.bf16.msra.mxu0 0
  %1368 = vmatprep.subr.bf16.mxu0 0
  %1369 = vmatpush1.bf16.msra.mxu0 0
  %1370 = vmatprep.subr.bf16.mxu0 0
  %1371 = vmatpush1.bf16.msra.mxu0 0
  %1372 = vmatprep.subr.bf16.mxu0 0
  %1373 = vmatpush1.bf16.msra.mxu0 %v1335
  %1374 = vmatprep.subr.bf16.mxu0 0
  %1375 = vmatpush1.bf16.msra.mxu0 %v1334
  %1376 = vmatprep.subr.bf16.mxu0 0
  %1377 = vmatpush1.bf16.msra.mxu0 %v1333
  %1378 = vmatprep.subr.bf16.mxu0 0
  %1379 = vmatpush1.bf16.msra.mxu0 %v1332
  %1380 = vmatprep.subr.bf16.mxu0 0
  %1381 = vmatpush2.bf16.msra.mxu0 0
  %1382 = vmatprep.subr.bf16.mxu0 0
  %1383 = vmatpush2.bf16.msra.mxu0 0
  %1384 = vmatprep.subr.bf16.mxu0 0
  %1385 = vmatpush2.bf16.msra.mxu0 0
  %1386 = vmatprep.subr.bf16.mxu0 0
  %1387 = vmatpush2.bf16.msra.mxu0 0
  %1388 = vmatprep.subr.bf16.mxu0 0
  %1389 = vmatpush2.bf16.msra.mxu0 0
  %1390 = vmatprep.subr.bf16.mxu0 0
  %1391 = vmatpush2.bf16.msra.mxu0 0
  %1392 = vmatprep.subr.bf16.mxu0 0
  %1393 = vmatpush2.bf16.msra.mxu0 0
  %1394 = vmatprep.subr.bf16.mxu0 0
  %1395 = vmatpush2.bf16.msra.mxu0 0
  %1396 = vmatprep.mubr.bf16.mxu0 0
  %1397 = vmatmul.mubr.bf16.gmra.mxu0 %v1341
  %v1398 = vpop.f32.mrf.mxu0
  %v1399 = vadd.f32 0.0, %v1398
  %v1400 = vpop.f32.mrf.mxu0
  %v1401 = vpop.f32.mrf.mxu0
  %v1402 = vadd.f32 0.0, %v1401
  %v1403 = vpop.f32.mrf.mxu0
  %1404 = vmatprep.mubr.bf16.mxu0 0
  %1405 = vmatmul.mubr.bf16.gmra.mxu0 %v1344
  %v1406 = vpop.f32.mrf.mxu0
  %v1407 = vadd.f32 0.0, %v1406
  %v1408 = vpop.f32.mrf.mxu0
  %v1409 = vpop.f32.mrf.mxu0
  %v1410 = vadd.f32 0.0, %v1409
  %v1411 = vpop.f32.mrf.mxu0
  %1412 = vmatprep.mubr.bf16.mxu0 0
  %1413 = vmatmul.mubr.bf16.gmra.mxu0 %v1347
  %v1414 = vpop.f32.mrf.mxu0
  %v1415 = vadd.f32 0.0, %v1414
  %v1416 = vpop.f32.mrf.mxu0
  %v1417 = vpop.f32.mrf.mxu0
  %v1418 = vadd.f32 0.0, %v1417
  %v1419 = vpop.f32.mrf.mxu0
  %1420 = vmatprep.mubr.bf16.mxu0 0
  %1421 = vmatmul.mubr.bf16.gmra.mxu0 %v1350
  %v1422 = vpop.f32.mrf.mxu0
  %v1423 = vadd.f32 0.0, %v1422
  %v1424 = vpop.f32.mrf.mxu0
  %v1425 = vpop.f32.mrf.mxu0
  %v1426 = vadd.f32 0.0, %v1425
  %v1427 = vpop.f32.mrf.mxu0
  %1428 = vmatprep.mubr.bf16.mxu0 0
  %1429 = vmatmul.mubr.bf16.gmra.mxu0 %v1353
  %v1430 = vpop.f32.mrf.mxu0
  %v1431 = vadd.f32 0.0, %v1430
  %v1432 = vpop.f32.mrf.mxu0
  %v1433 = vpop.f32.mrf.mxu0
  %v1434 = vadd.f32 0.0, %v1433
  %v1435 = vpop.f32.mrf.mxu0
  %1436 = vmatprep.mubr.bf16.mxu0 0
  %1437 = vmatmul.mubr.bf16.gmra.mxu0 %v1356
  %v1438 = vpop.f32.mrf.mxu0
  %v1439 = vadd.f32 0.0, %v1438
  %v1440 = vpop.f32.mrf.mxu0
  %v1441 = vpop.f32.mrf.mxu0
  %v1442 = vadd.f32 0.0, %v1441
  %v1443 = vpop.f32.mrf.mxu0
  %1444 = vmatprep.mubr.bf16.mxu0 0
  %1445 = vmatmul.mubr.bf16.gmra.mxu0 %v1359
  %v1446 = vpop.f32.mrf.mxu0
  %v1447 = vadd.f32 0.0, %v1446
  %v1448 = vpop.f32.mrf.mxu0
  %v1449 = vpop.f32.mrf.mxu0
  %v1450 = vadd.f32 0.0, %v1449
  %v1451 = vpop.f32.mrf.mxu0
  %1452 = vmatprep.mubr.bf16.mxu0 0
  %1453 = vmatmul.mubr.bf16.gmra.mxu0 %v1362
  %v1454 = vpop.f32.mrf.mxu0
  %v1455 = vadd.f32 0.0, %v1454
  %v1456 = vpop.f32.mrf.mxu0
  %v1457 = vpop.f32.mrf.mxu0
  %v1458 = vadd.f32 0.0, %v1457
  %v1459 = vpop.f32.mrf.mxu0
  %1460 = vdwg.mxu0
  %v1461 = vadd.f32 %v1218, %v1399
  %v1462 = vadd.f32 %v1219, %v1402
  %v1463 = vadd.f32 %v1220, %v1407
  %v1464 = vadd.f32 %v1221, %v1410
  %v1465 = vadd.f32 %v1222, %v1415
  %v1466 = vadd.f32 %v1223, %v1418
  %v1467 = vadd.f32 %v1224, %v1423
  %v1468 = vadd.f32 %v1225, %v1426
  %v1469 = vadd.f32 %v1226, %v1431
  %v1470 = vadd.f32 %v1227, %v1434
  %v1471 = vadd.f32 %v1228, %v1439
  %v1472 = vadd.f32 %v1229, %v1442
  %v1473 = vadd.f32 %v1230, %v1447
  %v1474 = vadd.f32 %v1231, %v1450
  %v1475 = vadd.f32 %v1232, %v1455
  %v1476 = vadd.f32 %v1233, %v1458
  %v1477 = vrot.slane %v458, 2
  %v1478 = vrot.slane %v459, 2
  %v1479 = vrot.slane %v460, 2
  %v1480 = vrot.slane %v461, 2
  %v1481 = vrot.slane %v462, 2
  %v1482 = vrot.slane %v463, 2
  %v1483 = vrot.slane %v464, 2
  %v1484 = vrot.slane %v465, 2
  %v1485 = vrot.slane %v466, 2
  %v1486 = vrot.slane %v467, 2
  %v1487 = vrot.slane %v468, 2
  %v1488 = vrot.slane %v469, 2
  %v1489 = vrot.slane %v470, 2
  %v1490 = vrot.slane %v471, 2
  %v1491 = vrot.slane %v472, 2
  %v1492 = vrot.slane %v473, 2
  %vm1493 = vcmp.lt.s32.totalorder %v475, 6
  %v1494 = vsel %vm1493, %v1491, %v1492
  %v1495 = vsel %vm1493, %v1490, %v1491
  %v1496 = vsel %vm1493, %v1489, %v1490
  %v1497 = vsel %vm1493, %v1488, %v1489
  %v1498 = vsel %vm1493, %v1487, %v1488
  %v1499 = vsel %vm1493, %v1486, %v1487
  %v1500 = vsel %vm1493, %v1485, %v1486
  %v1501 = vsel %vm1493, %v1484, %v1485
  %v1502 = vsel %vm1493, %v1483, %v1484
  %v1503 = vsel %vm1493, %v1482, %v1483
  %v1504 = vsel %vm1493, %v1481, %v1482
  %v1505 = vsel %vm1493, %v1480, %v1481
  %v1506 = vsel %vm1493, %v1479, %v1480
  %v1507 = vsel %vm1493, %v1478, %v1479
  %v1508 = vsel %vm1493, %v1477, %v1478
  %v1509 = vsel %vm1493, %v1492, %v1477
  %vm1510 = vcmp.lt.s32.totalorder %v497, 62
  %vm1511 = vcmp.lt.s32.totalorder %v504, 62
  %vm1512 = vcmp.lt.s32.totalorder %v511, 62
  %vm1513 = vcmp.lt.s32.totalorder %v518, 62
  %vm1514 = vcmp.lt.s32.totalorder %v525, 62
  %vm1515 = vcmp.lt.s32.totalorder %v532, 62
  %vm1516 = vcmp.lt.s32.totalorder %v539, 62
  %vm1517 = vcmp.lt.s32.totalorder %v546, 62
  %vm1518 = vcmp.lt.s32.totalorder %v553, 62
  %vm1519 = vcmp.lt.s32.totalorder %v560, 62
  %vm1520 = vcmp.lt.s32.totalorder %v567, 62
  %vm1521 = vcmp.lt.s32.totalorder %v574, 62
  %vm1522 = vcmp.lt.s32.totalorder %v581, 62
  %vm1523 = vcmp.lt.s32.totalorder %v588, 62
  %vm1524 = vcmp.lt.s32.totalorder %v595, 62
  %vm1525 = vcmp.lt.s32.totalorder %v602, 62
  %v1526 = vsel %vm1510, %v1508, 0.0
  %v1527 = vsel %vm1511, %v1507, 0.0
  %v1528 = vsel %vm1512, %v1506, 0.0
  %v1529 = vsel %vm1513, %v1505, 0.0
  %v1530 = vsel %vm1514, %v1504, 0.0
  %v1531 = vsel %vm1515, %v1503, 0.0
  %v1532 = vsel %vm1516, %v1502, 0.0
  %v1533 = vsel %vm1517, %v1501, 0.0
  %v1534 = vsel %vm1518, %v1500, 0.0
  %v1535 = vsel %vm1519, %v1499, 0.0
  %v1536 = vsel %vm1520, %v1498, 0.0
  %v1537 = vsel %vm1521, %v1497, 0.0
  %v1538 = vsel %vm1522, %v1496, 0.0
  %v1539 = vsel %vm1523, %v1495, 0.0
  %v1540 = vsel %vm1524, %v1494, 0.0
  %v1541 = vsel %vm1525, %v1509, 0.0
  %v1542 = vpack.c.bf16 %v1527, %v1526
  %v1543 = vpack.c.bf16 %v1529, %v1528
  %v1544 = vpack.c.bf16 %v1531, %v1530
  %v1545 = vpack.c.bf16 %v1533, %v1532
  %v1546 = vpack.c.bf16 %v1535, %v1534
  %v1547 = vpack.c.bf16 %v1537, %v1536
  %v1548 = vpack.c.bf16 %v1539, %v1538
  %v1549 = vpack.c.bf16 %v1541, %v1540
  %s1550 = scalar_lea.vmem %s4, 128
  %v1551 = vld [vmem:[%s1550] sm:$0xf]
  %v1552 = vld [vmem:[%s1550 + $0x4] sm:$0xf]
  %v1553 = vld [vmem:[%s1550 + $0x8] sm:$0xf]
  %v1554 = vld [vmem:[%s1550 + $0xc] sm:$0xf]
  %v1555 = vld [vmem:[%s1550 + $0x10] sm:$0xf]
  %v1556 = vld [vmem:[%s1550 + $0x14] sm:$0xf]
  %v1557 = vld [vmem:[%s1550 + $0x18] sm:$0xf]
  %v1558 = vld [vmem:[%s1550 + $0x1c] sm:$0xf]
  %v1567 = vunpack.c.l.b16 %v1551
  %v1568 = vunpack.c.l.b16 %v1552
  %v1569 = vunpack.c.l.b16 %v1553
  %v1570 = vunpack.c.l.b16 %v1554
  %v1571 = vunpack.c.l.b16 %v1555
  %v1572 = vunpack.c.l.b16 %v1556
  %v1573 = vunpack.c.l.b16 %v1557
  %v1574 = vunpack.c.l.b16 %v1558
  %v1575 = vpack.c.b16 %v1568, %v1567
  %v1576 = vpack.c.b16 %v1570, %v1569
  %v1577 = vpack.c.b16 %v1572, %v1571
  %v1578 = vpack.c.b16 %v1574, %v1573
  %v1584 = vsel %vm206, %v1542, 0
  %v1587 = vsel %vm206, %v1543, 0
  %v1590 = vsel %vm206, %v1544, 0
  %v1593 = vsel %vm206, %v1545, 0
  %v1596 = vsel %vm206, %v1546, 0
  %v1599 = vsel %vm206, %v1547, 0
  %v1602 = vsel %vm206, %v1548, 0
  %v1605 = vsel %vm206, %v1549, 0
  %1607 = vmatprep.subr.bf16.mxu0 0
  %1608 = vmatpush1.bf16.msra.mxu0 0
  %1609 = vmatprep.subr.bf16.mxu0 0
  %1610 = vmatpush1.bf16.msra.mxu0 0
  %1611 = vmatprep.subr.bf16.mxu0 0
  %1612 = vmatpush1.bf16.msra.mxu0 0
  %1613 = vmatprep.subr.bf16.mxu0 0
  %1614 = vmatpush1.bf16.msra.mxu0 0
  %1615 = vmatprep.subr.bf16.mxu0 0
  %1616 = vmatpush1.bf16.msra.mxu0 %v1578
  %1617 = vmatprep.subr.bf16.mxu0 0
  %1618 = vmatpush1.bf16.msra.mxu0 %v1577
  %1619 = vmatprep.subr.bf16.mxu0 0
  %1620 = vmatpush1.bf16.msra.mxu0 %v1576
  %1621 = vmatprep.subr.bf16.mxu0 0
  %1622 = vmatpush1.bf16.msra.mxu0 %v1575
  %1623 = vmatprep.subr.bf16.mxu0 0
  %1624 = vmatpush2.bf16.msra.mxu0 0
  %1625 = vmatprep.subr.bf16.mxu0 0
  %1626 = vmatpush2.bf16.msra.mxu0 0
  %1627 = vmatprep.subr.bf16.mxu0 0
  %1628 = vmatpush2.bf16.msra.mxu0 0
  %1629 = vmatprep.subr.bf16.mxu0 0
  %1630 = vmatpush2.bf16.msra.mxu0 0
  %1631 = vmatprep.subr.bf16.mxu0 0
  %1632 = vmatpush2.bf16.msra.mxu0 0
  %1633 = vmatprep.subr.bf16.mxu0 0
  %1634 = vmatpush2.bf16.msra.mxu0 0
  %1635 = vmatprep.subr.bf16.mxu0 0
  %1636 = vmatpush2.bf16.msra.mxu0 0
  %1637 = vmatprep.subr.bf16.mxu0 0
  %1638 = vmatpush2.bf16.msra.mxu0 0
  %1639 = vmatprep.mubr.bf16.mxu0 0
  %1640 = vmatmul.mubr.bf16.gmra.mxu0 %v1584
  %v1641 = vpop.f32.mrf.mxu0
  %v1642 = vadd.f32 0.0, %v1641
  %v1643 = vpop.f32.mrf.mxu0
  %v1644 = vpop.f32.mrf.mxu0
  %v1645 = vadd.f32 0.0, %v1644
  %v1646 = vpop.f32.mrf.mxu0
  %1647 = vmatprep.mubr.bf16.mxu0 0
  %1648 = vmatmul.mubr.bf16.gmra.mxu0 %v1587
  %v1649 = vpop.f32.mrf.mxu0
  %v1650 = vadd.f32 0.0, %v1649
  %v1651 = vpop.f32.mrf.mxu0
  %v1652 = vpop.f32.mrf.mxu0
  %v1653 = vadd.f32 0.0, %v1652
  %v1654 = vpop.f32.mrf.mxu0
  %1655 = vmatprep.mubr.bf16.mxu0 0
  %1656 = vmatmul.mubr.bf16.gmra.mxu0 %v1590
  %v1657 = vpop.f32.mrf.mxu0
  %v1658 = vadd.f32 0.0, %v1657
  %v1659 = vpop.f32.mrf.mxu0
  %v1660 = vpop.f32.mrf.mxu0
  %v1661 = vadd.f32 0.0, %v1660
  %v1662 = vpop.f32.mrf.mxu0
  %1663 = vmatprep.mubr.bf16.mxu0 0
  %1664 = vmatmul.mubr.bf16.gmra.mxu0 %v1593
  %v1665 = vpop.f32.mrf.mxu0
  %v1666 = vadd.f32 0.0, %v1665
  %v1667 = vpop.f32.mrf.mxu0
  %v1668 = vpop.f32.mrf.mxu0
  %v1669 = vadd.f32 0.0, %v1668
  %v1670 = vpop.f32.mrf.mxu0
  %1671 = vmatprep.mubr.bf16.mxu0 0
  %1672 = vmatmul.mubr.bf16.gmra.mxu0 %v1596
  %v1673 = vpop.f32.mrf.mxu0
  %v1674 = vadd.f32 0.0, %v1673
  %v1675 = vpop.f32.mrf.mxu0
  %v1676 = vpop.f32.mrf.mxu0
  %v1677 = vadd.f32 0.0, %v1676
  %v1678 = vpop.f32.mrf.mxu0
  %1679 = vmatprep.mubr.bf16.mxu0 0
  %1680 = vmatmul.mubr.bf16.gmra.mxu0 %v1599
  %v1681 = vpop.f32.mrf.mxu0
  %v1682 = vadd.f32 0.0, %v1681
  %v1683 = vpop.f32.mrf.mxu0
  %v1684 = vpop.f32.mrf.mxu0
  %v1685 = vadd.f32 0.0, %v1684
  %v1686 = vpop.f32.mrf.mxu0
  %1687 = vmatprep.mubr.bf16.mxu0 0
  %1688 = vmatmul.mubr.bf16.gmra.mxu0 %v1602
  %v1689 = vpop.f32.mrf.mxu0
  %v1690 = vadd.f32 0.0, %v1689
  %v1691 = vpop.f32.mrf.mxu0
  %v1692 = vpop.f32.mrf.mxu0
  %v1693 = vadd.f32 0.0, %v1692
  %v1694 = vpop.f32.mrf.mxu0
  %1695 = vmatprep.mubr.bf16.mxu0 0
  %1696 = vmatmul.mubr.bf16.gmra.mxu0 %v1605
  %v1697 = vpop.f32.mrf.mxu0
  %v1698 = vadd.f32 0.0, %v1697
  %v1699 = vpop.f32.mrf.mxu0
  %v1700 = vpop.f32.mrf.mxu0
  %v1701 = vadd.f32 0.0, %v1700
  %v1702 = vpop.f32.mrf.mxu0
  %1703 = vdwg.mxu0
  %v1704 = vadd.f32 %v1461, %v1642
  %v1705 = vadd.f32 %v1462, %v1645
  %v1706 = vadd.f32 %v1463, %v1650
  %v1707 = vadd.f32 %v1464, %v1653
  %v1708 = vadd.f32 %v1465, %v1658
  %v1709 = vadd.f32 %v1466, %v1661
  %v1710 = vadd.f32 %v1467, %v1666
  %v1711 = vadd.f32 %v1468, %v1669
  %v1712 = vadd.f32 %v1469, %v1674
  %v1713 = vadd.f32 %v1470, %v1677
  %v1714 = vadd.f32 %v1471, %v1682
  %v1715 = vadd.f32 %v1472, %v1685
  %v1716 = vadd.f32 %v1473, %v1690
  %v1717 = vadd.f32 %v1474, %v1693
  %v1718 = vadd.f32 %v1475, %v1698
  %v1719 = vadd.f32 %v1476, %v1701
  %v1720 = vld [vmem:[%s5] sm:$0x1]
  %v1721 = vld [vmem:[%s6] sm:$0x1]
  %v1722 = vsel %vm206, %v1704, 0.0
  %v1723 = vsel %vm206, %v1705, 0.0
  %v1724 = vadd.f32 %v1722, %v1723
  %v1725 = vsel %vm206, %v1706, 0.0
  %v1726 = vadd.f32 %v1724, %v1725
  %v1727 = vsel %vm206, %v1707, 0.0
  %v1728 = vadd.f32 %v1726, %v1727
  %v1729 = vsel %vm206, %v1708, 0.0
  %v1730 = vadd.f32 %v1728, %v1729
  %v1731 = vsel %vm206, %v1709, 0.0
  %v1732 = vadd.f32 %v1730, %v1731
  %v1733 = vsel %vm206, %v1710, 0.0
  %v1734 = vadd.f32 %v1732, %v1733
  %v1735 = vsel %vm206, %v1711, 0.0
  %v1736 = vadd.f32 %v1734, %v1735
  %v1737 = vsel %vm206, %v1712, 0.0
  %v1738 = vadd.f32 %v1736, %v1737
  %v1739 = vsel %vm206, %v1713, 0.0
  %v1740 = vadd.f32 %v1738, %v1739
  %v1741 = vsel %vm206, %v1714, 0.0
  %v1742 = vadd.f32 %v1740, %v1741
  %v1743 = vsel %vm206, %v1715, 0.0
  %v1744 = vadd.f32 %v1742, %v1743
  %v1745 = vsel %vm206, %v1716, 0.0
  %v1746 = vadd.f32 %v1744, %v1745
  %v1747 = vsel %vm206, %v1717, 0.0
  %v1748 = vadd.f32 %v1746, %v1747
  %v1749 = vsel %vm206, %v1718, 0.0
  %v1750 = vadd.f32 %v1748, %v1749
  %v1751 = vsel %vm206, %v1719, 0.0
  %v1752 = vadd.f32 %v1750, %v1751
  %v1753 = vrot.slane %v1752, 4
  %v1754 = vadd.f32 %v1752, %v1753
  %v1755 = vrot.slane %v1754, 2
  %v1756 = vadd.f32 %v1754, %v1755
  %v1757 = vrot.slane %v1756, 1
  %v1758 = vadd.f32 %v1756, %v1757
  %v1759 = vmul.f32 %v1758, %v244
  %v1760 = vsub.f32 %v1704, %v1759
  %v1761 = vsub.f32 %v1705, %v1759
  %v1762 = vsub.f32 %v1706, %v1759
  %v1763 = vsub.f32 %v1707, %v1759
  %v1764 = vsub.f32 %v1708, %v1759
  %v1765 = vsub.f32 %v1709, %v1759
  %v1766 = vsub.f32 %v1710, %v1759
  %v1767 = vsub.f32 %v1711, %v1759
  %v1768 = vsub.f32 %v1712, %v1759
  %v1769 = vsub.f32 %v1713, %v1759
  %v1770 = vsub.f32 %v1714, %v1759
  %v1771 = vsub.f32 %v1715, %v1759
  %v1772 = vsub.f32 %v1716, %v1759
  %v1773 = vsub.f32 %v1717, %v1759
  %v1774 = vsub.f32 %v1718, %v1759
  %v1775 = vsub.f32 %v1719, %v1759
  %v1776 = vmul.f32 %v1760, %v1760
  %v1777 = vmul.f32 %v1761, %v1761
  %v1778 = vmul.f32 %v1762, %v1762
  %v1779 = vmul.f32 %v1763, %v1763
  %v1780 = vmul.f32 %v1764, %v1764
  %v1781 = vmul.f32 %v1765, %v1765
  %v1782 = vmul.f32 %v1766, %v1766
  %v1783 = vmul.f32 %v1767, %v1767
  %v1784 = vmul.f32 %v1768, %v1768
  %v1785 = vmul.f32 %v1769, %v1769
  %v1786 = vmul.f32 %v1770, %v1770
  %v1787 = vmul.f32 %v1771, %v1771
  %v1788 = vmul.f32 %v1772, %v1772
  %v1789 = vmul.f32 %v1773, %v1773
  %v1790 = vmul.f32 %v1774, %v1774
  %v1791 = vmul.f32 %v1775, %v1775
  %v1792 = vsel %vm206, %v1776, 0.0
  %v1793 = vsel %vm206, %v1777, 0.0
  %v1794 = vadd.f32 %v1792, %v1793
  %v1795 = vsel %vm206, %v1778, 0.0
  %v1796 = vadd.f32 %v1794, %v1795
  %v1797 = vsel %vm206, %v1779, 0.0
  %v1798 = vadd.f32 %v1796, %v1797
  %v1799 = vsel %vm206, %v1780, 0.0
  %v1800 = vadd.f32 %v1798, %v1799
  %v1801 = vsel %vm206, %v1781, 0.0
  %v1802 = vadd.f32 %v1800, %v1801
  %v1803 = vsel %vm206, %v1782, 0.0
  %v1804 = vadd.f32 %v1802, %v1803
  %v1805 = vsel %vm206, %v1783, 0.0
  %v1806 = vadd.f32 %v1804, %v1805
  %v1807 = vsel %vm206, %v1784, 0.0
  %v1808 = vadd.f32 %v1806, %v1807
  %v1809 = vsel %vm206, %v1785, 0.0
  %v1810 = vadd.f32 %v1808, %v1809
  %v1811 = vsel %vm206, %v1786, 0.0
  %v1812 = vadd.f32 %v1810, %v1811
  %v1813 = vsel %vm206, %v1787, 0.0
  %v1814 = vadd.f32 %v1812, %v1813
  %v1815 = vsel %vm206, %v1788, 0.0
  %v1816 = vadd.f32 %v1814, %v1815
  %v1817 = vsel %vm206, %v1789, 0.0
  %v1818 = vadd.f32 %v1816, %v1817
  %v1819 = vsel %vm206, %v1790, 0.0
  %v1820 = vadd.f32 %v1818, %v1819
  %v1821 = vsel %vm206, %v1791, 0.0
  %v1822 = vadd.f32 %v1820, %v1821
  %v1823 = vrot.slane %v1822, 4
  %v1824 = vadd.f32 %v1822, %v1823
  %v1825 = vrot.slane %v1824, 2
  %v1826 = vadd.f32 %v1824, %v1825
  %v1827 = vrot.slane %v1826, 1
  %v1828 = vadd.f32 %v1826, %v1827
  %v1829 = vmul.f32 %v1828, %v244
  %v1830 = vadd.f32 %v1829, 1e-05
  %v1831 = vrsqrt.pop %v1830
  %v1832 = vmul.f32 %v1760, %v1831
  %v1833 = vmul.f32 %v1761, %v1831
  %v1834 = vmul.f32 %v1762, %v1831
  %v1835 = vmul.f32 %v1763, %v1831
  %v1836 = vmul.f32 %v1764, %v1831
  %v1837 = vmul.f32 %v1765, %v1831
  %v1838 = vmul.f32 %v1766, %v1831
  %v1839 = vmul.f32 %v1767, %v1831
  %v1840 = vmul.f32 %v1768, %v1831
  %v1841 = vmul.f32 %v1769, %v1831
  %v1842 = vmul.f32 %v1770, %v1831
  %v1843 = vmul.f32 %v1771, %v1831
  %v1844 = vmul.f32 %v1772, %v1831
  %v1845 = vmul.f32 %v1773, %v1831
  %v1846 = vmul.f32 %v1774, %v1831
  %v1847 = vmul.f32 %v1775, %v1831
  %v1849 = vlaneseq
  %v1850 = vshrl.u32 %v1849, 7
  %v1851 = vsub.s32 0, %v1850
  %v1852 = vrot.slane %v1720, %v1851
  %v1854 = vmul.f32 %v1832, %v1852
  %v1855 = vmul.f32 %v1833, %v1852
  %v1856 = vmul.f32 %v1834, %v1852
  %v1857 = vmul.f32 %v1835, %v1852
  %v1858 = vmul.f32 %v1836, %v1852
  %v1859 = vmul.f32 %v1837, %v1852
  %v1860 = vmul.f32 %v1838, %v1852
  %v1861 = vmul.f32 %v1839, %v1852
  %v1862 = vmul.f32 %v1840, %v1852
  %v1863 = vmul.f32 %v1841, %v1852
  %v1864 = vmul.f32 %v1842, %v1852
  %v1865 = vmul.f32 %v1843, %v1852
  %v1866 = vmul.f32 %v1844, %v1852
  %v1867 = vmul.f32 %v1845, %v1852
  %v1868 = vmul.f32 %v1846, %v1852
  %v1869 = vmul.f32 %v1847, %v1852
  %v1871 = vlaneseq
  %v1872 = vshrl.u32 %v1871, 7
  %v1873 = vsub.s32 0, %v1872
  %v1874 = vrot.slane %v1721, %v1873
  %v1876 = vadd.f32 %v1854, %v1874
  %v1877 = vadd.f32 %v1855, %v1874
  %v1878 = vadd.f32 %v1856, %v1874
  %v1879 = vadd.f32 %v1857, %v1874
  %v1880 = vadd.f32 %v1858, %v1874
  %v1881 = vadd.f32 %v1859, %v1874
  %v1882 = vadd.f32 %v1860, %v1874
  %v1883 = vadd.f32 %v1861, %v1874
  %v1884 = vadd.f32 %v1862, %v1874
  %v1885 = vadd.f32 %v1863, %v1874
  %v1886 = vadd.f32 %v1864, %v1874
  %v1887 = vadd.f32 %v1865, %v1874
  %v1888 = vadd.f32 %v1866, %v1874
  %v1889 = vadd.f32 %v1867, %v1874
  %v1890 = vadd.f32 %v1868, %v1874
  %v1891 = vadd.f32 %v1869, %v1874
  %v1892 = vsub.f32 0.0, %v1876
  %v1893 = vsub.f32 0.0, %v1877
  %v1894 = vsub.f32 0.0, %v1878
  %v1895 = vsub.f32 0.0, %v1879
  %v1896 = vsub.f32 0.0, %v1880
  %v1897 = vsub.f32 0.0, %v1881
  %v1898 = vsub.f32 0.0, %v1882
  %v1899 = vsub.f32 0.0, %v1883
  %v1900 = vsub.f32 0.0, %v1884
  %v1901 = vsub.f32 0.0, %v1885
  %v1902 = vsub.f32 0.0, %v1886
  %v1903 = vsub.f32 0.0, %v1887
  %v1904 = vsub.f32 0.0, %v1888
  %v1905 = vsub.f32 0.0, %v1889
  %v1906 = vsub.f32 0.0, %v1890
  %v1907 = vsub.f32 0.0, %v1891
  %v1908 = vmul.f32 %v1892, 1.442695
  %v1909 = vpow.pop %v1908
  %v1910 = vmul.f32 %v1893, 1.442695
  %v1911 = vpow.pop %v1910
  %v1912 = vmul.f32 %v1894, 1.442695
  %v1913 = vpow.pop %v1912
  %v1914 = vmul.f32 %v1895, 1.442695
  %v1915 = vpow.pop %v1914
  %v1916 = vmul.f32 %v1896, 1.442695
  %v1917 = vpow.pop %v1916
  %v1918 = vmul.f32 %v1897, 1.442695
  %v1919 = vpow.pop %v1918
  %v1920 = vmul.f32 %v1898, 1.442695
  %v1921 = vpow.pop %v1920
  %v1922 = vmul.f32 %v1899, 1.442695
  %v1923 = vpow.pop %v1922
  %v1924 = vmul.f32 %v1900, 1.442695
  %v1925 = vpow.pop %v1924
  %v1926 = vmul.f32 %v1901, 1.442695
  %v1927 = vpow.pop %v1926
  %v1928 = vmul.f32 %v1902, 1.442695
  %v1929 = vpow.pop %v1928
  %v1930 = vmul.f32 %v1903, 1.442695
  %v1931 = vpow.pop %v1930
  %v1932 = vmul.f32 %v1904, 1.442695
  %v1933 = vpow.pop %v1932
  %v1934 = vmul.f32 %v1905, 1.442695
  %v1935 = vpow.pop %v1934
  %v1936 = vmul.f32 %v1906, 1.442695
  %v1937 = vpow.pop %v1936
  %v1938 = vmul.f32 %v1907, 1.442695
  %v1939 = vpow.pop %v1938
  %v1940 = vadd.f32 %v1909, 1.0
  %v1941 = vadd.f32 %v1911, 1.0
  %v1942 = vadd.f32 %v1913, 1.0
  %v1943 = vadd.f32 %v1915, 1.0
  %v1944 = vadd.f32 %v1917, 1.0
  %v1945 = vadd.f32 %v1919, 1.0
  %v1946 = vadd.f32 %v1921, 1.0
  %v1947 = vadd.f32 %v1923, 1.0
  %v1948 = vadd.f32 %v1925, 1.0
  %v1949 = vadd.f32 %v1927, 1.0
  %v1950 = vadd.f32 %v1929, 1.0
  %v1951 = vadd.f32 %v1931, 1.0
  %v1952 = vadd.f32 %v1933, 1.0
  %v1953 = vadd.f32 %v1935, 1.0
  %v1954 = vadd.f32 %v1937, 1.0
  %v1955 = vadd.f32 %v1939, 1.0
  %v1956 = vrcp.pop %v1940
  %v1957 = vrcp.pop %v1941
  %v1958 = vrcp.pop %v1942
  %v1959 = vrcp.pop %v1943
  %v1960 = vrcp.pop %v1944
  %v1961 = vrcp.pop %v1945
  %v1962 = vrcp.pop %v1946
  %v1963 = vrcp.pop %v1947
  %v1964 = vrcp.pop %v1948
  %v1965 = vrcp.pop %v1949
  %v1966 = vrcp.pop %v1950
  %v1967 = vrcp.pop %v1951
  %v1968 = vrcp.pop %v1952
  %v1969 = vrcp.pop %v1953
  %v1970 = vrcp.pop %v1954
  %v1971 = vrcp.pop %v1955
  %v1972 = vmul.f32 %v1876, %v1956
  %v1973 = vmul.f32 %v1877, %v1957
  %v1974 = vmul.f32 %v1878, %v1958
  %v1975 = vmul.f32 %v1879, %v1959
  %v1976 = vmul.f32 %v1880, %v1960
  %v1977 = vmul.f32 %v1881, %v1961
  %v1978 = vmul.f32 %v1882, %v1962
  %v1979 = vmul.f32 %v1883, %v1963
  %v1980 = vmul.f32 %v1884, %v1964
  %v1981 = vmul.f32 %v1885, %v1965
  %v1982 = vmul.f32 %v1886, %v1966
  %v1983 = vmul.f32 %v1887, %v1967
  %v1984 = vmul.f32 %v1888, %v1968
  %v1985 = vmul.f32 %v1889, %v1969
  %v1986 = vmul.f32 %v1890, %v1970
  %v1987 = vmul.f32 %v1891, %v1971
  %v1988 = vpack.c.bf16 %v1973, %v1972
  %v1989 = vpack.c.bf16 %v1975, %v1974
  %v1990 = vpack.c.bf16 %v1977, %v1976
  %v1991 = vpack.c.bf16 %v1979, %v1978
  %v1992 = vpack.c.bf16 %v1981, %v1980
  %v1993 = vpack.c.bf16 %v1983, %v1982
  %v1994 = vpack.c.bf16 %v1985, %v1984
  %v1995 = vpack.c.bf16 %v1987, %v1986
  %v1996 = vld [vmem:[%s7] sm:$0xf]
  %v1997 = vld [vmem:[%s7 + $0x4] sm:$0xf]
  %v1998 = vld [vmem:[%s7 + $0x8] sm:$0xf]
  %v1999 = vld [vmem:[%s7 + $0xc] sm:$0xf]
  %v2000 = vld [vmem:[%s7 + $0x10] sm:$0xf]
  %v2001 = vld [vmem:[%s7 + $0x14] sm:$0xf]
  %v2002 = vld [vmem:[%s7 + $0x18] sm:$0xf]
  %v2003 = vld [vmem:[%s7 + $0x1c] sm:$0xf]
  %v2012 = vunpack.c.l.b16 %v1996
  %v2013 = vunpack.c.l.b16 %v1997
  %v2014 = vunpack.c.l.b16 %v1998
  %v2015 = vunpack.c.l.b16 %v1999
  %v2016 = vunpack.c.l.b16 %v2000
  %v2017 = vunpack.c.l.b16 %v2001
  %v2018 = vunpack.c.l.b16 %v2002
  %v2019 = vunpack.c.l.b16 %v2003
  %v2020 = vpack.c.b16 %v2013, %v2012
  %v2021 = vpack.c.b16 %v2015, %v2014
  %v2022 = vpack.c.b16 %v2017, %v2016
  %v2023 = vpack.c.b16 %v2019, %v2018
  %v2029 = vsel %vm206, %v1988, 0
  %v2032 = vsel %vm206, %v1989, 0
  %v2035 = vsel %vm206, %v1990, 0
  %v2038 = vsel %vm206, %v1991, 0
  %v2041 = vsel %vm206, %v1992, 0
  %v2044 = vsel %vm206, %v1993, 0
  %v2047 = vsel %vm206, %v1994, 0
  %v2050 = vsel %vm206, %v1995, 0
  %2052 = vmatprep.subr.bf16.mxu0 0
  %2053 = vmatpush1.bf16.msra.mxu0 0
  %2054 = vmatprep.subr.bf16.mxu0 0
  %2055 = vmatpush1.bf16.msra.mxu0 0
  %2056 = vmatprep.subr.bf16.mxu0 0
  %2057 = vmatpush1.bf16.msra.mxu0 0
  %2058 = vmatprep.subr.bf16.mxu0 0
  %2059 = vmatpush1.bf16.msra.mxu0 0
  %2060 = vmatprep.subr.bf16.mxu0 0
  %2061 = vmatpush1.bf16.msra.mxu0 %v2023
  %2062 = vmatprep.subr.bf16.mxu0 0
  %2063 = vmatpush1.bf16.msra.mxu0 %v2022
  %2064 = vmatprep.subr.bf16.mxu0 0
  %2065 = vmatpush1.bf16.msra.mxu0 %v2021
  %2066 = vmatprep.subr.bf16.mxu0 0
  %2067 = vmatpush1.bf16.msra.mxu0 %v2020
  %2068 = vmatprep.subr.bf16.mxu0 0
  %2069 = vmatpush2.bf16.msra.mxu0 0
  %2070 = vmatprep.subr.bf16.mxu0 0
  %2071 = vmatpush2.bf16.msra.mxu0 0
  %2072 = vmatprep.subr.bf16.mxu0 0
  %2073 = vmatpush2.bf16.msra.mxu0 0
  %2074 = vmatprep.subr.bf16.mxu0 0
  %2075 = vmatpush2.bf16.msra.mxu0 0
  %2076 = vmatprep.subr.bf16.mxu0 0
  %2077 = vmatpush2.bf16.msra.mxu0 0
  %2078 = vmatprep.subr.bf16.mxu0 0
  %2079 = vmatpush2.bf16.msra.mxu0 0
  %2080 = vmatprep.subr.bf16.mxu0 0
  %2081 = vmatpush2.bf16.msra.mxu0 0
  %2082 = vmatprep.subr.bf16.mxu0 0
  %2083 = vmatpush2.bf16.msra.mxu0 0
  %2084 = vmatprep.mubr.bf16.mxu0 0
  %2085 = vmatmul.mubr.bf16.gmra.mxu0 %v2029
  %v2086 = vpop.f32.mrf.mxu0
  %v2087 = vadd.f32 0.0, %v2086
  %v2088 = vpop.f32.mrf.mxu0
  %v2089 = vpop.f32.mrf.mxu0
  %v2090 = vadd.f32 0.0, %v2089
  %v2091 = vpop.f32.mrf.mxu0
  %2092 = vmatprep.mubr.bf16.mxu0 0
  %2093 = vmatmul.mubr.bf16.gmra.mxu0 %v2032
  %v2094 = vpop.f32.mrf.mxu0
  %v2095 = vadd.f32 0.0, %v2094
  %v2096 = vpop.f32.mrf.mxu0
  %v2097 = vpop.f32.mrf.mxu0
  %v2098 = vadd.f32 0.0, %v2097
  %v2099 = vpop.f32.mrf.mxu0
  %2100 = vmatprep.mubr.bf16.mxu0 0
  %2101 = vmatmul.mubr.bf16.gmra.mxu0 %v2035
  %v2102 = vpop.f32.mrf.mxu0
  %v2103 = vadd.f32 0.0, %v2102
  %v2104 = vpop.f32.mrf.mxu0
  %v2105 = vpop.f32.mrf.mxu0
  %v2106 = vadd.f32 0.0, %v2105
  %v2107 = vpop.f32.mrf.mxu0
  %2108 = vmatprep.mubr.bf16.mxu0 0
  %2109 = vmatmul.mubr.bf16.gmra.mxu0 %v2038
  %v2110 = vpop.f32.mrf.mxu0
  %v2111 = vadd.f32 0.0, %v2110
  %v2112 = vpop.f32.mrf.mxu0
  %v2113 = vpop.f32.mrf.mxu0
  %v2114 = vadd.f32 0.0, %v2113
  %v2115 = vpop.f32.mrf.mxu0
  %2116 = vmatprep.mubr.bf16.mxu0 0
  %2117 = vmatmul.mubr.bf16.gmra.mxu0 %v2041
  %v2118 = vpop.f32.mrf.mxu0
  %v2119 = vadd.f32 0.0, %v2118
  %v2120 = vpop.f32.mrf.mxu0
  %v2121 = vpop.f32.mrf.mxu0
  %v2122 = vadd.f32 0.0, %v2121
  %v2123 = vpop.f32.mrf.mxu0
  %2124 = vmatprep.mubr.bf16.mxu0 0
  %2125 = vmatmul.mubr.bf16.gmra.mxu0 %v2044
  %v2126 = vpop.f32.mrf.mxu0
  %v2127 = vadd.f32 0.0, %v2126
  %v2128 = vpop.f32.mrf.mxu0
  %v2129 = vpop.f32.mrf.mxu0
  %v2130 = vadd.f32 0.0, %v2129
  %v2131 = vpop.f32.mrf.mxu0
  %2132 = vmatprep.mubr.bf16.mxu0 0
  %2133 = vmatmul.mubr.bf16.gmra.mxu0 %v2047
  %v2134 = vpop.f32.mrf.mxu0
  %v2135 = vadd.f32 0.0, %v2134
  %v2136 = vpop.f32.mrf.mxu0
  %v2137 = vpop.f32.mrf.mxu0
  %v2138 = vadd.f32 0.0, %v2137
  %v2139 = vpop.f32.mrf.mxu0
  %2140 = vmatprep.mubr.bf16.mxu0 0
  %2141 = vmatmul.mubr.bf16.gmra.mxu0 %v2050
  %v2142 = vpop.f32.mrf.mxu0
  %v2143 = vadd.f32 0.0, %v2142
  %v2144 = vpop.f32.mrf.mxu0
  %v2145 = vpop.f32.mrf.mxu0
  %v2146 = vadd.f32 0.0, %v2145
  %v2147 = vpop.f32.mrf.mxu0
  %2148 = vdwg.mxu0
  %v2149 = vld [vmem:[%s8] sm:$0x1]
  %v2150 = vld [vmem:[%s9] sm:$0x1]
  %v2151 = vsel %vm82, %v2087, 0.0
  %v2152 = vsel %vm82, %v2090, 0.0
  %v2153 = vadd.f32 %v2151, %v2152
  %v2154 = vsel %vm82, %v2095, 0.0
  %v2155 = vadd.f32 %v2153, %v2154
  %v2156 = vsel %vm82, %v2098, 0.0
  %v2157 = vadd.f32 %v2155, %v2156
  %v2158 = vsel %vm82, %v2103, 0.0
  %v2159 = vadd.f32 %v2157, %v2158
  %v2160 = vsel %vm82, %v2106, 0.0
  %v2161 = vadd.f32 %v2159, %v2160
  %v2162 = vsel %vm82, %v2111, 0.0
  %v2163 = vadd.f32 %v2161, %v2162
  %v2164 = vsel %vm82, %v2114, 0.0
  %v2165 = vadd.f32 %v2163, %v2164
  %v2166 = vsel %vm82, %v2119, 0.0
  %v2167 = vadd.f32 %v2165, %v2166
  %v2168 = vsel %vm82, %v2122, 0.0
  %v2169 = vadd.f32 %v2167, %v2168
  %v2170 = vsel %vm82, %v2127, 0.0
  %v2171 = vadd.f32 %v2169, %v2170
  %v2172 = vsel %vm82, %v2130, 0.0
  %v2173 = vadd.f32 %v2171, %v2172
  %v2174 = vsel %vm82, %v2135, 0.0
  %v2175 = vadd.f32 %v2173, %v2174
  %v2176 = vsel %vm82, %v2138, 0.0
  %v2177 = vadd.f32 %v2175, %v2176
  %v2178 = vsel %vm82, %v2143, 0.0
  %v2179 = vadd.f32 %v2177, %v2178
  %v2180 = vsel %vm82, %v2146, 0.0
  %v2181 = vadd.f32 %v2179, %v2180
  %v2182 = vrot.slane %v2181, 4
  %v2183 = vadd.f32 %v2181, %v2182
  %v2184 = vrot.slane %v2183, 2
  %v2185 = vadd.f32 %v2183, %v2184
  %v2186 = vrot.slane %v2185, 1
  %v2187 = vadd.f32 %v2185, %v2186
  %v2188 = vmul.f32 %v2187, %v244
  %v2189 = vsub.f32 %v2087, %v2188
  %v2190 = vsub.f32 %v2090, %v2188
  %v2191 = vsub.f32 %v2095, %v2188
  %v2192 = vsub.f32 %v2098, %v2188
  %v2193 = vsub.f32 %v2103, %v2188
  %v2194 = vsub.f32 %v2106, %v2188
  %v2195 = vsub.f32 %v2111, %v2188
  %v2196 = vsub.f32 %v2114, %v2188
  %v2197 = vsub.f32 %v2119, %v2188
  %v2198 = vsub.f32 %v2122, %v2188
  %v2199 = vsub.f32 %v2127, %v2188
  %v2200 = vsub.f32 %v2130, %v2188
  %v2201 = vsub.f32 %v2135, %v2188
  %v2202 = vsub.f32 %v2138, %v2188
  %v2203 = vsub.f32 %v2143, %v2188
  %v2204 = vsub.f32 %v2146, %v2188
  %v2205 = vmul.f32 %v2189, %v2189
  %v2206 = vmul.f32 %v2190, %v2190
  %v2207 = vmul.f32 %v2191, %v2191
  %v2208 = vmul.f32 %v2192, %v2192
  %v2209 = vmul.f32 %v2193, %v2193
  %v2210 = vmul.f32 %v2194, %v2194
  %v2211 = vmul.f32 %v2195, %v2195
  %v2212 = vmul.f32 %v2196, %v2196
  %v2213 = vmul.f32 %v2197, %v2197
  %v2214 = vmul.f32 %v2198, %v2198
  %v2215 = vmul.f32 %v2199, %v2199
  %v2216 = vmul.f32 %v2200, %v2200
  %v2217 = vmul.f32 %v2201, %v2201
  %v2218 = vmul.f32 %v2202, %v2202
  %v2219 = vmul.f32 %v2203, %v2203
  %v2220 = vmul.f32 %v2204, %v2204
  %v2221 = vsel %vm82, %v2205, 0.0
  %v2222 = vsel %vm82, %v2206, 0.0
  %v2223 = vadd.f32 %v2221, %v2222
  %v2224 = vsel %vm82, %v2207, 0.0
  %v2225 = vadd.f32 %v2223, %v2224
  %v2226 = vsel %vm82, %v2208, 0.0
  %v2227 = vadd.f32 %v2225, %v2226
  %v2228 = vsel %vm82, %v2209, 0.0
  %v2229 = vadd.f32 %v2227, %v2228
  %v2230 = vsel %vm82, %v2210, 0.0
  %v2231 = vadd.f32 %v2229, %v2230
  %v2232 = vsel %vm82, %v2211, 0.0
  %v2233 = vadd.f32 %v2231, %v2232
  %v2234 = vsel %vm82, %v2212, 0.0
  %v2235 = vadd.f32 %v2233, %v2234
  %v2236 = vsel %vm82, %v2213, 0.0
  %v2237 = vadd.f32 %v2235, %v2236
  %v2238 = vsel %vm82, %v2214, 0.0
  %v2239 = vadd.f32 %v2237, %v2238
  %v2240 = vsel %vm82, %v2215, 0.0
  %v2241 = vadd.f32 %v2239, %v2240
  %v2242 = vsel %vm82, %v2216, 0.0
  %v2243 = vadd.f32 %v2241, %v2242
  %v2244 = vsel %vm82, %v2217, 0.0
  %v2245 = vadd.f32 %v2243, %v2244
  %v2246 = vsel %vm82, %v2218, 0.0
  %v2247 = vadd.f32 %v2245, %v2246
  %v2248 = vsel %vm82, %v2219, 0.0
  %v2249 = vadd.f32 %v2247, %v2248
  %v2250 = vsel %vm82, %v2220, 0.0
  %v2251 = vadd.f32 %v2249, %v2250
  %v2252 = vrot.slane %v2251, 4
  %v2253 = vadd.f32 %v2251, %v2252
  %v2254 = vrot.slane %v2253, 2
  %v2255 = vadd.f32 %v2253, %v2254
  %v2256 = vrot.slane %v2255, 1
  %v2257 = vadd.f32 %v2255, %v2256
  %v2258 = vmul.f32 %v2257, %v244
  %v2259 = vadd.f32 %v2258, 1e-05
  %v2260 = vrsqrt.pop %v2259
  %v2261 = vmul.f32 %v2189, %v2260
  %v2262 = vmul.f32 %v2190, %v2260
  %v2263 = vmul.f32 %v2191, %v2260
  %v2264 = vmul.f32 %v2192, %v2260
  %v2265 = vmul.f32 %v2193, %v2260
  %v2266 = vmul.f32 %v2194, %v2260
  %v2267 = vmul.f32 %v2195, %v2260
  %v2268 = vmul.f32 %v2196, %v2260
  %v2269 = vmul.f32 %v2197, %v2260
  %v2270 = vmul.f32 %v2198, %v2260
  %v2271 = vmul.f32 %v2199, %v2260
  %v2272 = vmul.f32 %v2200, %v2260
  %v2273 = vmul.f32 %v2201, %v2260
  %v2274 = vmul.f32 %v2202, %v2260
  %v2275 = vmul.f32 %v2203, %v2260
  %v2276 = vmul.f32 %v2204, %v2260
  %v2278 = vlaneseq
  %v2279 = vshrl.u32 %v2278, 7
  %v2280 = vsub.s32 0, %v2279
  %v2281 = vrot.slane %v2149, %v2280
  %v2283 = vmul.f32 %v2261, %v2281
  %v2284 = vmul.f32 %v2262, %v2281
  %v2285 = vmul.f32 %v2263, %v2281
  %v2286 = vmul.f32 %v2264, %v2281
  %v2287 = vmul.f32 %v2265, %v2281
  %v2288 = vmul.f32 %v2266, %v2281
  %v2289 = vmul.f32 %v2267, %v2281
  %v2290 = vmul.f32 %v2268, %v2281
  %v2291 = vmul.f32 %v2269, %v2281
  %v2292 = vmul.f32 %v2270, %v2281
  %v2293 = vmul.f32 %v2271, %v2281
  %v2294 = vmul.f32 %v2272, %v2281
  %v2295 = vmul.f32 %v2273, %v2281
  %v2296 = vmul.f32 %v2274, %v2281
  %v2297 = vmul.f32 %v2275, %v2281
  %v2298 = vmul.f32 %v2276, %v2281
  %v2300 = vlaneseq
  %v2301 = vshrl.u32 %v2300, 7
  %v2302 = vsub.s32 0, %v2301
  %v2303 = vrot.slane %v2150, %v2302
  %v2305 = vadd.f32 %v2283, %v2303
  %v2306 = vadd.f32 %v2284, %v2303
  %v2307 = vadd.f32 %v2285, %v2303
  %v2308 = vadd.f32 %v2286, %v2303
  %v2309 = vadd.f32 %v2287, %v2303
  %v2310 = vadd.f32 %v2288, %v2303
  %v2311 = vadd.f32 %v2289, %v2303
  %v2312 = vadd.f32 %v2290, %v2303
  %v2313 = vadd.f32 %v2291, %v2303
  %v2314 = vadd.f32 %v2292, %v2303
  %v2315 = vadd.f32 %v2293, %v2303
  %v2316 = vadd.f32 %v2294, %v2303
  %v2317 = vadd.f32 %v2295, %v2303
  %v2318 = vadd.f32 %v2296, %v2303
  %v2319 = vadd.f32 %v2297, %v2303
  %v2320 = vadd.f32 %v2298, %v2303
  %v2321 = vsel %vm82, %v2305, 0.0
  %v2322 = vsel %vm82, %v2306, 0.0
  %v2323 = vadd.f32 %v2321, %v2322
  %v2324 = vsel %vm82, %v2307, 0.0
  %v2325 = vadd.f32 %v2323, %v2324
  %v2326 = vsel %vm82, %v2308, 0.0
  %v2327 = vadd.f32 %v2325, %v2326
  %v2328 = vsel %vm82, %v2309, 0.0
  %v2329 = vadd.f32 %v2327, %v2328
  %v2330 = vsel %vm82, %v2310, 0.0
  %v2331 = vadd.f32 %v2329, %v2330
  %v2332 = vsel %vm82, %v2311, 0.0
  %v2333 = vadd.f32 %v2331, %v2332
  %v2334 = vsel %vm82, %v2312, 0.0
  %v2335 = vadd.f32 %v2333, %v2334
  %v2336 = vrot.slane %v2335, 4
  %v2337 = vadd.f32 %v2335, %v2336
  %v2338 = vrot.slane %v2337, 2
  %v2339 = vadd.f32 %v2337, %v2338
  %v2340 = vrot.slane %v2339, 1
  %v2341 = vadd.f32 %v2339, %v2340
  %v2342 = vsel %vm82, %v2313, 0.0
  %v2343 = vsel %vm82, %v2314, 0.0
  %v2344 = vadd.f32 %v2342, %v2343
  %v2345 = vsel %vm82, %v2315, 0.0
  %v2346 = vadd.f32 %v2344, %v2345
  %v2347 = vsel %vm82, %v2316, 0.0
  %v2348 = vadd.f32 %v2346, %v2347
  %v2349 = vsel %vm82, %v2317, 0.0
  %v2350 = vadd.f32 %v2348, %v2349
  %v2351 = vsel %vm82, %v2318, 0.0
  %v2352 = vadd.f32 %v2350, %v2351
  %v2353 = vsel %vm82, %v2319, 0.0
  %v2354 = vadd.f32 %v2352, %v2353
  %v2355 = vsel %vm82, %v2320, 0.0
  %v2356 = vadd.f32 %v2354, %v2355
  %v2357 = vrot.slane %v2356, 4
  %v2358 = vadd.f32 %v2356, %v2357
  %v2359 = vrot.slane %v2358, 2
  %v2360 = vadd.f32 %v2358, %v2359
  %v2361 = vrot.slane %v2360, 1
  %v2362 = vadd.f32 %v2360, %v2361
  %v2363 = vrcp.pop 64.0
  %v2364 = vmul.f32 %v2341, %v2363
  %v2365 = vmul.f32 %v2362, %v2363
  %v2366 = vld [vmem:[%s10] sm:$0xff]
  %v2367 = vld [vmem:[%s10 + $0x8] sm:$0xff]
  %v2368 = vld [vmem:[%s10 + $0x10] sm:$0xff]
  %v2369 = vld [vmem:[%s10 + $0x18] sm:$0xff]
  %vm2372 = vcmask 1041409
  %v2373 = vsel %vm2372, %v2365, %v2364
  %v2374 = vsel %vm82, %v2373, 0
  %2376 = vmatprep.subr.mxu0 0.0
  %2377 = vmatpush1.msra.mxu0 0.0
  %2378 = vmatprep.subr.mxu0 0.0
  %2379 = vmatpush1.msra.mxu0 0.0
  %2380 = vmatprep.subr.mxu0 0.0
  %2381 = vmatpush1.msra.mxu0 0.0
  %2382 = vmatprep.subr.mxu0 0.0
  %2383 = vmatpush1.msra.mxu0 0.0
  %2384 = vmatprep.subr.mxu0 0.0
  %2385 = vmatpush1.msra.mxu0 0.0
  %2386 = vmatprep.subr.mxu0 0.0
  %2387 = vmatpush1.msra.mxu0 0.0
  %2388 = vmatprep.subr.mxu0 0.0
  %2389 = vmatpush1.msra.mxu0 0.0
  %2390 = vmatprep.subr.mxu0 0.0
  %2391 = vmatpush1.msra.mxu0 0.0
  %2392 = vmatprep.subr.mxu0 0.0
  %2393 = vmatpush1.msra.mxu0 0.0
  %2394 = vmatprep.subr.mxu0 0.0
  %2395 = vmatpush1.msra.mxu0 0.0
  %2396 = vmatprep.subr.mxu0 0.0
  %2397 = vmatpush1.msra.mxu0 0.0
  %2398 = vmatprep.subr.mxu0 0.0
  %2399 = vmatpush1.msra.mxu0 0.0
  %2400 = vmatprep.subr.mxu0 0.0
  %2401 = vmatpush1.msra.mxu0 %v2369
  %2402 = vmatprep.subr.mxu0 0.0
  %2403 = vmatpush1.msra.mxu0 %v2368
  %2404 = vmatprep.subr.mxu0 0.0
  %2405 = vmatpush1.msra.mxu0 %v2367
  %2406 = vmatprep.subr.mxu0 0.0
  %2407 = vmatpush1.msra.mxu0 %v2366
  %2408 = vmatprep.subr.mxu0 0.0
  %2409 = vmatpush2.msra.mxu0 0.0
  %2410 = vmatprep.subr.mxu0 0.0
  %2411 = vmatpush2.msra.mxu0 0.0
  %2412 = vmatprep.subr.mxu0 0.0
  %2413 = vmatpush2.msra.mxu0 0.0
  %2414 = vmatprep.subr.mxu0 0.0
  %2415 = vmatpush2.msra.mxu0 0.0
  %2416 = vmatprep.subr.mxu0 0.0
  %2417 = vmatpush2.msra.mxu0 0.0
  %2418 = vmatprep.subr.mxu0 0.0
  %2419 = vmatpush2.msra.mxu0 0.0
  %2420 = vmatprep.subr.mxu0 0.0
  %2421 = vmatpush2.msra.mxu0 0.0
  %2422 = vmatprep.subr.mxu0 0.0
  %2423 = vmatpush2.msra.mxu0 0.0
  %2424 = vmatprep.subr.mxu0 0.0
  %2425 = vmatpush2.msra.mxu0 0.0
  %2426 = vmatprep.subr.mxu0 0.0
  %2427 = vmatpush2.msra.mxu0 0.0
  %2428 = vmatprep.subr.mxu0 0.0
  %2429 = vmatpush2.msra.mxu0 0.0
  %2430 = vmatprep.subr.mxu0 0.0
  %2431 = vmatpush2.msra.mxu0 0.0
  %2432 = vmatprep.subr.mxu0 0.0
  %2433 = vmatpush2.msra.mxu0 0.0
  %2434 = vmatprep.subr.mxu0 0.0
  %2435 = vmatpush2.msra.mxu0 0.0
  %2436 = vmatprep.subr.mxu0 0.0
  %2437 = vmatpush2.msra.mxu0 0.0
  %2438 = vmatprep.subr.mxu0 0.0
  %2439 = vmatpush2.msra.mxu0 0.0
  %2440 = vmatprep.mubr.f32.mxu0 0.0
  %2441 = vmatmul.mubr.f32.gmra.mxu0 %v2374
  %v2442 = vpop.f32.mrf.mxu0
  %v2443 = vadd.f32 0.0, %v2442
  %v2444 = vpop.f32.mrf.mxu0
  %2445 = vdwg.mxu0
  %v2446 = vmax.f32 %v2443, 0.0
  %v2447 = vld [vmem:[%s11] sm:$0x3]
  %vm2448 = vcmask 15360
  %v2450 = vsel %vm2448, %v2446, 0
  %vm2452 = vcmask 1041408
  %v2454 = vsel %vm2452, %v2447, 0
  %2456 = vmatprep.subr.mxu0 0.0
  %2457 = vmatpush1.msra.mxu0 0.0
  %2458 = vmatprep.subr.mxu0 0.0
  %2459 = vmatpush1.msra.mxu0 0.0
  %2460 = vmatprep.subr.mxu0 0.0
  %2461 = vmatpush1.msra.mxu0 0.0
  %2462 = vmatprep.subr.mxu0 0.0
  %2463 = vmatpush1.msra.mxu0 0.0
  %2464 = vmatprep.subr.mxu0 0.0
  %2465 = vmatpush1.msra.mxu0 0.0
  %2466 = vmatprep.subr.mxu0 0.0
  %2467 = vmatpush1.msra.mxu0 0.0
  %2468 = vmatprep.subr.mxu0 0.0
  %2469 = vmatpush1.msra.mxu0 0.0
  %2470 = vmatprep.subr.mxu0 0.0
  %2471 = vmatpush1.msra.mxu0 0.0
  %2472 = vmatprep.subr.mxu0 0.0
  %2473 = vmatpush1.msra.mxu0 0.0
  %2474 = vmatprep.subr.mxu0 0.0
  %2475 = vmatpush1.msra.mxu0 0.0
  %2476 = vmatprep.subr.mxu0 0.0
  %2477 = vmatpush1.msra.mxu0 0.0
  %2478 = vmatprep.subr.mxu0 0.0
  %2479 = vmatpush1.msra.mxu0 0.0
  %2480 = vmatprep.subr.mxu0 0.0
  %2481 = vmatpush1.msra.mxu0 0.0
  %2482 = vmatprep.subr.mxu0 0.0
  %2483 = vmatpush1.msra.mxu0 0.0
  %2484 = vmatprep.subr.mxu0 0.0
  %2485 = vmatpush1.msra.mxu0 0.0
  %2486 = vmatprep.subr.mxu0 0.0
  %2487 = vmatpush1.msra.mxu0 %v2454
  %2488 = vmatprep.subr.mxu0 0.0
  %2489 = vmatpush2.msra.mxu0 0.0
  %2490 = vmatprep.subr.mxu0 0.0
  %2491 = vmatpush2.msra.mxu0 0.0
  %2492 = vmatprep.subr.mxu0 0.0
  %2493 = vmatpush2.msra.mxu0 0.0
  %2494 = vmatprep.subr.mxu0 0.0
  %2495 = vmatpush2.msra.mxu0 0.0
  %2496 = vmatprep.subr.mxu0 0.0
  %2497 = vmatpush2.msra.mxu0 0.0
  %2498 = vmatprep.subr.mxu0 0.0
  %2499 = vmatpush2.msra.mxu0 0.0
  %2500 = vmatprep.subr.mxu0 0.0
  %2501 = vmatpush2.msra.mxu0 0.0
  %2502 = vmatprep.subr.mxu0 0.0
  %2503 = vmatpush2.msra.mxu0 0.0
  %2504 = vmatprep.subr.mxu0 0.0
  %2505 = vmatpush2.msra.mxu0 0.0
  %2506 = vmatprep.subr.mxu0 0.0
  %2507 = vmatpush2.msra.mxu0 0.0
  %2508 = vmatprep.subr.mxu0 0.0
  %2509 = vmatpush2.msra.mxu0 0.0
  %2510 = vmatprep.subr.mxu0 0.0
  %2511 = vmatpush2.msra.mxu0 0.0
  %2512 = vmatprep.subr.mxu0 0.0
  %2513 = vmatpush2.msra.mxu0 0.0
  %2514 = vmatprep.subr.mxu0 0.0
  %2515 = vmatpush2.msra.mxu0 0.0
  %2516 = vmatprep.subr.mxu0 0.0
  %2517 = vmatpush2.msra.mxu0 0.0
  %2518 = vmatprep.subr.mxu0 0.0
  %2519 = vmatpush2.msra.mxu0 0.0
  %2520 = vmatprep.mubr.f32.mxu0 0.0
  %2521 = vmatmul.mubr.f32.gmra.mxu0 %v2450
  %v2522 = vpop.f32.mrf.mxu0
  %v2523 = vadd.f32 0.0, %v2522
  %v2524 = vpop.f32.mrf.mxu0
  %2525 = vdwg.mxu0
  %v2526 = vsub.f32 0.0, %v2523
  %v2527 = vmul.f32 %v2526, 1.442695
  %v2528 = vpow.pop %v2527
  %v2529 = vadd.f32 %v2528, 1.0
  %v2530 = vrcp.pop %v2529
  %v2531 = vmul.f32 1.0, %v2530
  %v2534 = vunpack.c.l.s4 1966171168
  %v2535 = vunpack.c.0.s8 %v2534
  %v2536 = vlaneseq
  %v2537 = vshrl.u32 %v2536, 7
  %v2538 = vsub.s32 %v2535, %v2537
  %v2539 = vrot.slane %v2531, %v2538
  %v2540 = vcombine.high %v2539, %v2539
  %v2542 = vunpack.c.l.s4 1966171168
  %v2543 = vunpack.c.0.s8 %v2542
  %v2544 = vlaneseq
  %v2545 = vshrl.u32 %v2544, 7
  %v2546 = vsub.s32 %v2543, %v2545
  %v2547 = vrot.slane %v2539, %v2546
  %v2549 = vunpack.c.l.s4 1966171168
  %v2550 = vunpack.c.0.s8 %v2549
  %v2551 = vlaneseq
  %v2552 = vshrl.u32 %v2551, 7
  %v2553 = vsub.s32 %v2550, %v2552
  %v2554 = vrot.slane %v2540, %v2553
  %v2555 = vlaneseq
  %v2556 = vshrl.u32 %v2555, 7
  %v2557 = vsub.s32 0, %v2556
  %v2558 = vrot.slane %v2547, %v2557
  %v2559 = vlaneseq
  %v2560 = vshrl.u32 %v2559, 7
  %v2561 = vsub.s32 0, %v2560
  %v2562 = vrot.slane %v2554, %v2561
  %v2565 = vmul.f32 %v2305, %v2558
  %v2566 = vmul.f32 %v2306, %v2558
  %v2567 = vmul.f32 %v2307, %v2558
  %v2568 = vmul.f32 %v2308, %v2558
  %v2569 = vmul.f32 %v2309, %v2558
  %v2570 = vmul.f32 %v2310, %v2558
  %v2571 = vmul.f32 %v2311, %v2558
  %v2572 = vmul.f32 %v2312, %v2558
  %v2573 = vmul.f32 %v2313, %v2562
  %v2574 = vmul.f32 %v2314, %v2562
  %v2575 = vmul.f32 %v2315, %v2562
  %v2576 = vmul.f32 %v2316, %v2562
  %v2577 = vmul.f32 %v2317, %v2562
  %v2578 = vmul.f32 %v2318, %v2562
  %v2579 = vmul.f32 %v2319, %v2562
  %v2580 = vmul.f32 %v2320, %v2562
  %v2581 = vmul.f32 %v2565, 0.1
  %v2582 = vmul.f32 %v2566, 0.1
  %v2583 = vmul.f32 %v2567, 0.1
  %v2584 = vmul.f32 %v2568, 0.1
  %v2585 = vmul.f32 %v2569, 0.1
  %v2586 = vmul.f32 %v2570, 0.1
  %v2587 = vmul.f32 %v2571, 0.1
  %v2588 = vmul.f32 %v2572, 0.1
  %v2589 = vmul.f32 %v2573, 0.1
  %v2590 = vmul.f32 %v2574, 0.1
  %v2591 = vmul.f32 %v2575, 0.1
  %v2592 = vmul.f32 %v2576, 0.1
  %v2593 = vmul.f32 %v2577, 0.1
  %v2594 = vmul.f32 %v2578, 0.1
  %v2595 = vmul.f32 %v2579, 0.1
  %v2596 = vmul.f32 %v2580, 0.1
  %v2597 = vadd.f32 %v42, %v2581
  %v2598 = vadd.f32 %v43, %v2582
  %v2599 = vadd.f32 %v44, %v2583
  %v2600 = vadd.f32 %v45, %v2584
  %v2601 = vadd.f32 %v46, %v2585
  %v2602 = vadd.f32 %v47, %v2586
  %v2603 = vadd.f32 %v48, %v2587
  %v2604 = vadd.f32 %v49, %v2588
  %v2605 = vadd.f32 %v50, %v2589
  %v2606 = vadd.f32 %v51, %v2590
  %v2607 = vadd.f32 %v52, %v2591
  %v2608 = vadd.f32 %v53, %v2592
  %v2609 = vadd.f32 %v54, %v2593
  %v2610 = vadd.f32 %v55, %v2594
  %v2611 = vadd.f32 %v56, %v2595
  %v2612 = vadd.f32 %v57, %v2596
  %2613 = vst.msk [vmem:[%s12] sm:$0xff] %vm82, %v2597
  %2614 = vst.msk [vmem:[%s12 + $0x8] sm:$0xff] %vm82, %v2598
  %2615 = vst.msk [vmem:[%s12 + $0x10] sm:$0xff] %vm82, %v2599
  %2616 = vst.msk [vmem:[%s12 + $0x18] sm:$0xff] %vm82, %v2600
  %2617 = vst.msk [vmem:[%s12 + $0x20] sm:$0xff] %vm82, %v2601
  %2618 = vst.msk [vmem:[%s12 + $0x28] sm:$0xff] %vm82, %v2602
  %2619 = vst.msk [vmem:[%s12 + $0x30] sm:$0xff] %vm82, %v2603
  %2620 = vst.msk [vmem:[%s12 + $0x38] sm:$0xff] %vm82, %v2604
  %2621 = vst.msk [vmem:[%s12 + $0x40] sm:$0xff] %vm82, %v2605
  %2622 = vst.msk [vmem:[%s12 + $0x48] sm:$0xff] %vm82, %v2606
  %2623 = vst.msk [vmem:[%s12 + $0x50] sm:$0xff] %vm82, %v2607
  %2624 = vst.msk [vmem:[%s12 + $0x58] sm:$0xff] %vm82, %v2608
  %2625 = vst.msk [vmem:[%s12 + $0x60] sm:$0xff] %vm82, %v2609
  %2626 = vst.msk [vmem:[%s12 + $0x68] sm:$0xff] %vm82, %v2610
  %2627 = vst.msk [vmem:[%s12 + $0x70] sm:$0xff] %vm82, %v2611
  %2628 = vst.msk [vmem:[%s12 + $0x78] sm:$0xff] %vm82, %v2612
  // Predicated region
  $region50: #{tpu_custom_call.1} parent=0 // pred_check
    _
  $region51: #{tpu_custom_call.1} parent=0 // pred_check_branch
    %2630 = sbr.rel (0) target = $region53
  $region52: #{tpu_custom_call.1} parent=0 // pred_region
    _
  $region53: #{tpu_custom_call.1} parent=0 // pred_fallthru
    _
  // Predicated region
  $region54: #{tpu_custom_call.1} parent=0 // pred_check
    _
  $region55: #{tpu_custom_call.1} parent=0 // pred_check_branch
    %2632 = sbr.rel (0) target = $region57
  $region56: #{tpu_custom_call.1} parent=0 // pred_region
    _
  $region57: #{tpu_custom_call.1} parent=0 // pred_fallthru
    _

</llo_original>
